<compile_context>
chip_gen: v6e
topology: v6e:2x2x1
jax: 0.10.0
libtpu: 0.0.40
codegen_flags: <defaults>
</compile_context>

<pallas_src>
import functools
import math

import jax
import jax.numpy as jnp
from jax import lax
from jax.experimental import pallas as pl
from jax.experimental.pallas import tpu as pltpu


def _lstm_kernel(x_ref, wih_ref, whh_ref, b_ref, out_ref,
                 h_sc, c_sc, g_sc, hbuf, *,
                 hid_dim, hid_pad, t_chunk, n_tchunks, tail):
    H, Hp, Tc = hid_dim, hid_pad, t_chunk
    G = 4 * Hp
    Bb = out_ref.shape[0]
    in_dim = x_ref.shape[2]

    # New batch block (inner time axis restarts) -> reset recurrent state.
    @pl.when(pl.program_id(1) == 0)
    def _():
        h_sc[...] = jnp.zeros_like(h_sc)
        c_sc[...] = jnp.zeros_like(c_sc)

    # ---- Hoisted input projection for the whole chunk (one big GEMM). ----
    # x block is time-major (Tc, Bb, in): merging the leading dims is layout
    # trivial (Bb % 8 == 0), and the result lands directly in the time-major
    # pre-gate scratch -> no transpose on this path.
    xt = x_ref[...].reshape(Tc * Bb, in_dim)
    pre = jnp.dot(xt, wih_ref[...], preferred_element_type=jnp.float32)
    g_sc[...] = (pre + b_ref[...]).reshape(Tc, Bb, G)

    # Loop-invariant recurrent weights hoisted off the serial chain.
    # TODO(synk): pin W_hh^T in the MXU across the chunk via
    # pltpu.matmul_push_rhs / matmul_acc_lhs / matmul_pop to drop the per-step
    # RHS feed from the latency chain.
    whh = whh_ref[...]

    def step(t, carry):
        h, c = carry                                       # (Bb, Hp) f32, gate-padded
        g = g_sc[t] + jnp.dot(h.astype(whh.dtype), whh,
                              preferred_element_type=jnp.float32)
        # Per-gate 128-lane padding -> each slice is a whole-vreg pick.
        i_g = jax.nn.sigmoid(g[:, 0:Hp])
        f_g = jax.nn.sigmoid(g[:, Hp:2 * Hp])
        g_g = jnp.tanh(g[:, 2 * Hp:3 * Hp])
        o_g = jax.nn.sigmoid(g[:, 3 * Hp:4 * Hp])
        c_new = f_g * c + i_g * g_g
        h_new = o_g * jnp.tanh(c_new)
        hbuf[t] = h_new              # aligned time-major scratch store (off-chain)
        return h_new, c_new

    def run(lo, hi, carry):
        if hi <= lo:
            return carry
        # TODO(synk): re-sweep unroll (4/8/16) once shapes are fixed in prod.
        return lax.fori_loop(lo, hi, step, carry, unroll=min(hi - lo, 8))

    # The first `tail` steps are always valid; only full (non-last) chunks run
    # the remaining steps -> no wasted serial iterations on time padding.
    h1, c1 = run(0, tail, (h_sc[...], c_sc[...]))
    h_sc[...] = h1
    c_sc[...] = c1
    if tail < Tc and n_tchunks > 1:
        @pl.when(pl.program_id(1) < n_tchunks - 1)
        def _():
            h2, c2 = run(tail, Tc, (h_sc[...], c_sc[...]))
            h_sc[...] = h2
            c_sc[...] = c2

    # ---- Single relayout + one bulk store per chunk (replaces Tc masked
    #      one-sublane-row stores on the recurrence chain). ----
    if hasattr(pltpu, "einshape"):
        hb = pltpu.einshape("tbh->bth", hbuf[...])         # (Bb, Tc, Hp)
        if Hp != H:
            hb = hb[:, :, :H]
        out_ref[...] = hb.astype(out_ref.dtype)
    else:
        # TODO(synk): fallback without pltpu.einshape — static per-row copies
        # (still off the serial recurrence chain).
        for t in range(Tc):
            out_ref[:, t, :] = hbuf[t][:, :H].astype(out_ref.dtype)


def lstm_vid_forward(x, w_ih, w_hh, b_ih, b_hh, *,
                     compute_dtype=jnp.bfloat16, t_chunk=64, batch_block=32):
    """x: (B, T, in_dim) f32.  Returns (out (B,T,H) f32, hidden (B,H) f32)."""
    B, T, in_dim = x.shape
    four_h = w_ih.shape[0]
    H = four_h // 4
    Hp = -(-H // 128) * 128                     # per-gate lane padding (vreg-aligned)
    G = 4 * Hp

    # ---- batch blocking (sublane-aligned; >= 2 blocks when B allows -> v7x
    #      megacore can shard the only parallel axis). ----
    ceil8 = lambda v: -(-v // 8) * 8
    Bb = max(8, (min(batch_block, ceil8(B)) // 8) * 8)
    if B >= 16 and -(-B // Bb) < 2:
        Bb = max(8, ((ceil8(B) // 2) // 8) * 8)
    Bp = -(-B // Bb) * Bb

    # ---- time chunking: Tc multiple of 8 when several chunks are needed. ----
    t_req = max(8, (max(t_chunk, 8) // 8) * 8)
    if T <= t_req:
        Tc, Tp = T, T                           # single chunk: full-extent block
    else:
        Tc = t_req
        Tp = -(-T // Tc) * Tc
    n_tc = Tp // Tc
    tail = T - (n_tc - 1) * Tc                  # valid steps in the last chunk

    # ---- weights: transpose + per-gate 128-lane zero padding + summed bias. ----
    def pad_gate_cols(w):                       # (rows, 4H) -> (rows, 4*Hp)
        if Hp == H:
            return w
        r = w.shape[0]
        return jnp.pad(w.reshape(r, 4, H), ((0, 0), (0, 0), (0, Hp - H))).reshape(r, G)

    wih_t = pad_gate_cols(jnp.transpose(w_ih)).astype(compute_dtype)            # (in, G)
    whh_t = pad_gate_cols(jnp.transpose(w_hh))                                  # (H, G)
    whh_t = jnp.pad(whh_t, ((0, Hp - H), (0, 0))).astype(compute_dtype)         # (Hp, G)
    bias = pad_gate_cols((b_ih + b_hh).reshape(1, four_h)).astype(jnp.float32)  # (1, G)

    # ---- x: single padding copy, produced time-major (no extra HBM pass). ----
    x_p = jnp.zeros((Tp, Bp, in_dim), compute_dtype)
    x_p = x_p.at[:T, :B, :].set(jnp.transpose(x, (1, 0, 2)).astype(compute_dtype))

    # ---- explicit VMEM budget (v7x has 64 MiB / TC; default scoped 16-32 MiB).
    it = jnp.dtype(compute_dtype).itemsize
    in_l = -(-in_dim // 128) * 128
    est = (2 * Tc * Bb * in_l * it              # x blocks (double buffered, lane-padded)
           + 2 * Bb * Tc * Hp * 4               # out blocks
           + 2 * Tc * Bb * G * 4                # g_sc + projection intermediate
           + Tc * Bb * Hp * 4                   # hbuf
           + 2 * Bb * Hp * 4                    # h, c state
           + 2 * (in_dim + Hp) * G * it + 2 * G * 4)
    vmem_limit = int(min(64 * 1024 * 1024, max(32 * 1024 * 1024, 2 * est)))

    cost = pl.CostEstimate(
        flops=int(2 * B * T * (in_dim + H) * four_h),
        transcendentals=int(6 * B * T * H),
        bytes_accessed=int(x.size * it + B * T * H * 4
                           + (wih_t.size + whh_t.size) * it + bias.size * 4),
    )

    kernel = functools.partial(_lstm_kernel, hid_dim=H, hid_pad=Hp,
                               t_chunk=Tc, n_tchunks=n_tc, tail=tail)

    out_p = pl.pallas_call(
        kernel,
        out_shape=jax.ShapeDtypeStruct((Bp, Tp, H), jnp.float32),
        grid_spec=pltpu.PrefetchScalarGridSpec(
            num_scalar_prefetch=0,
            grid=(Bp // Bb, n_tc),
            in_specs=[
                pl.BlockSpec((Tc, Bb, in_dim), lambda b, t: (t, b, 0)),   # x (time-major)
                pl.BlockSpec((in_dim, G), lambda b, t: (0, 0)),           # W_ih^T (padded)
                pl.BlockSpec((Hp, G), lambda b, t: (0, 0)),               # W_hh^T (padded)
                pl.BlockSpec((1, G), lambda b, t: (0, 0)),                # summed bias
            ],
            out_specs=pl.BlockSpec((Bb, Tc, H), lambda b, t: (b, t, 0)),  # out chunk
            scratch_shapes=[
                pltpu.VMEM((Bb, Hp), jnp.float32),         # h state (gate-padded lanes)
                pltpu.VMEM((Bb, Hp), jnp.float32),         # c state
                pltpu.VMEM((Tc, Bb, G), jnp.float32),      # time-major pre-gates
                pltpu.VMEM((Tc, Bb, Hp), jnp.float32),     # time-major h buffer
            ],
        ),
        compiler_params=pltpu.CompilerParams(
            dimension_semantics=("parallel", "arbitrary"),
            vmem_limit_bytes=vmem_limit),
        cost_estimate=cost,
    )(x_p, wih_t, whh_t, bias)

    out = out_p[:B, :T, :]
    hidden = out[:, -1, :]            # h_n[-1] == h at the last valid timestep
    return out, hidden
    # TODO(synk): n_layers > 1 would stack this call layer by layer; the module
    # default (and its forward) uses a single layer, which is what is kerneled.


def _lstm_reference(x, w_ih, w_hh, b_ih, b_hh):
    """Pure-JAX reference matching torch.nn.LSTM (batch_first) semantics."""
    B, T, _ = x.shape
    H = w_hh.shape[1]
    bias = b_ih + b_hh

    def step(carry, x_t):
        h, c = carry
        gates = x_t @ w_ih.T + h @ w_hh.T + bias
        i = jax.nn.sigmoid(gates[:, 0 * H:1 * H])
        f = jax.nn.sigmoid(gates[:, 1 * H:2 * H])
        g = jnp.tanh(gates[:, 2 * H:3 * H])
        o = jax.nn.sigmoid(gates[:, 3 * H:4 * H])
        c = f * c + i * g
        h = o * jnp.tanh(c)
        return (h, c), h

    init = (jnp.zeros((B, H), jnp.float32), jnp.zeros((B, H), jnp.float32))
    (h_n, _), hs = lax.scan(step, init, jnp.transpose(x, (1, 0, 2)))
    return jnp.transpose(hs, (1, 0, 2)), h_n


if __name__ == "__main__":
    B, T, IN_DIM, HID_DIM = 2, 8, 4, 32

    key = jax.random.PRNGKey(0)
    kx, k1, k2, k3, k4 = jax.random.split(key, 5)

    # PyTorch-style U(-1/sqrt(H), 1/sqrt(H)) init.
    bound = 1.0 / jnp.sqrt(jnp.float32(HID_DIM))
    w_ih = jax.random.uniform(k1, (4 * HID_DIM, IN_DIM), jnp.float32, -bound, bound)
    w_hh = jax.random.uniform(k2, (4 * HID_DIM, HID_DIM), jnp.float32, -bound, bound)
    b_ih = jax.random.uniform(k3, (4 * HID_DIM,), jnp.float32, -bound, bound)
    b_hh = jax.random.uniform(k4, (4 * HID_DIM,), jnp.float32, -bound, bound)

    x = jax.random.normal(kx, (B, T, IN_DIM), jnp.float32)

    out_ref, hid_ref = _lstm_reference(x, w_ih, w_hh, b_ih, b_hh)

    # f32 operand path (strict-ish check).
    # TODO(synk): pass precision=lax.Precision.HIGHEST to the in-kernel dots if
    # bit-faithful f32 MXU matmuls are ever required.
    out32, hid32 = lstm_vid_forward(x, w_ih, w_hh, b_ih, b_hh,
                                    compute_dtype=jnp.float32)
    jax.block_until_ready((out32, hid32))
    assert out32.shape == (B, T, HID_DIM) and hid32.shape == (B, HID_DIM)
    assert jnp.allclose(out32, out_ref, atol=2e-4, rtol=2e-4)
    assert jnp.allclose(hid32, hid_ref, atol=2e-4, rtol=2e-4)

    # bf16 MXU operand path (preferred on v6e/v7x); f32 accumulation + f32 gate
    # math, so tolerance is looser but still tight.
    out16, hid16 = lstm_vid_forward(x, w_ih, w_hh, b_ih, b_hh,
                                    compute_dtype=jnp.bfloat16)
    jax.block_until_ready((out16, hid16))
    assert out16.shape == (B, T, HID_DIM) and hid16.shape == (B, HID_DIM)
    assert jnp.allclose(out16, out_ref, atol=3e-2, rtol=3e-2)
    assert jnp.allclose(hid16, hid_ref, atol=3e-2, rtol=3e-2)

    print("KERNEL_OK")
</pallas_src>

<mosaic_0001>
module attributes {stable_mosaic.version = 11 : i64} {
  func.func @_lstm_kernel(%arg0: i32, %arg1: i32, %arg2: memref<8x8x4xf32, #tpu.memory_space<vmem>>, %arg3: memref<4x512xf32, #tpu.memory_space<vmem>>, %arg4: memref<128x512xf32, #tpu.memory_space<vmem>>, %arg5: memref<1x512xf32, #tpu.memory_space<vmem>>, %arg6: memref<8x8x32xf32, #tpu.memory_space<vmem>>, %arg7: memref<8x128xf32, #tpu.memory_space<vmem>>, %arg8: memref<8x128xf32, #tpu.memory_space<vmem>>, %arg9: memref<8x8x512xf32, #tpu.memory_space<vmem>>, %arg10: memref<8x8x128xf32, #tpu.memory_space<vmem>>) attributes {dimension_semantics = [#tpu.dimension_semantics<parallel>, #tpu.dimension_semantics<arbitrary>], iteration_bounds = array<i64: 1, 1>, scalar_prefetch = 0 : i64, scratch_operands = 4 : i64, tpu.core_type = #tpu.core_type<tc>, window_params = [{transform_indices = @transform_0, window_bounds = array<i64: 8, 8, 4>}, {pipeline_mode = #tpu.pipeline_mode<synchronous>, transform_indices = @transform_1, window_bounds = array<i64: 4, 512>}, {pipeline_mode = #tpu.pipeline_mode<synchronous>, transform_indices = @transform_2, window_bounds = array<i64: 128, 512>}, {pipeline_mode = #tpu.pipeline_mode<synchronous>, transform_indices = @transform_3, window_bounds = array<i64: 1, 512>}, {transform_indices = @transform_4, window_bounds = array<i64: 8, 8, 32>}]} {
    %c0_i32 = arith.constant 0 : i32
    %0 = arith.cmpi eq, %arg1, %c0_i32 : i32
    %1 = arith.extui %0 : i1 to i32
    %c0_i32_0 = arith.constant 0 : i32
    %2 = arith.cmpi ne, %1, %c0_i32_0 : i32
    scf.if %2 {
      %cst_91 = arith.constant 0.000000e+00 : f32
      %293 = vector.broadcast %cst_91 : f32 to vector<8x128xf32>
      %c0_92 = arith.constant 0 : index
      %c0_93 = arith.constant 0 : index
      %294 = vector.load %arg7[%c0_92, %c0_93] : memref<8x128xf32, #tpu.memory_space<vmem>>, vector<8x128xf32>
      tpu.vector_store %arg7[%c0_92, %c0_93], %293 {strides = array<i32>} : memref<8x128xf32, #tpu.memory_space<vmem>>, vector<8x128xf32>,
      %cst_94 = arith.constant 0.000000e+00 : f32
      %295 = vector.broadcast %cst_94 : f32 to vector<8x128xf32>
      %c0_95 = arith.constant 0 : index
      %c0_96 = arith.constant 0 : index
      %296 = vector.load %arg8[%c0_95, %c0_96] : memref<8x128xf32, #tpu.memory_space<vmem>>, vector<8x128xf32>
      tpu.vector_store %arg8[%c0_95, %c0_96], %295 {strides = array<i32>} : memref<8x128xf32, #tpu.memory_space<vmem>>, vector<8x128xf32>,
    } else {
    }
    %c0 = arith.constant 0 : index
    %c0_1 = arith.constant 0 : index
    %c0_2 = arith.constant 0 : index
    %3 = vector.load %arg2[%c0, %c0_1, %c0_2] : memref<8x8x4xf32, #tpu.memory_space<vmem>>, vector<8x8x4xf32>
    %4 = vector.shape_cast %3 : vector<8x8x4xf32> to vector<64x4xf32>
    %c0_3 = arith.constant 0 : index
    %c0_4 = arith.constant 0 : index
    %5 = vector.load %arg3[%c0_3, %c0_4] : memref<4x512xf32, #tpu.memory_space<vmem>>, vector<4x512xf32>
    %cst = arith.constant dense<0.000000e+00> : vector<64x512xf32>
    %6 = tpu.matmul %4, %5, %cst {dimension_numbers = #tpu.dot_dimension_numbers<[1], [0], [0], [1], [0, 0, 1, 1], [], []>} : vector<64x4xf32>, vector<4x512xf32>, vector<64x512xf32> -> vector<64x512xf32>
    %c0_5 = arith.constant 0 : index
    %c0_6 = arith.constant 0 : index
    %7 = vector.load %arg5[%c0_5, %c0_6] : memref<1x512xf32, #tpu.memory_space<vmem>>, vector<1x512xf32>
    %8 = vector.broadcast %7 : vector<1x512xf32> to vector<64x512xf32>
    %9 = arith.addf %6, %8 : vector<64x512xf32>
    %10 = vector.shape_cast %9 : vector<64x512xf32> to vector<8x8x512xf32>
    %c0_7 = arith.constant 0 : index
    %c0_8 = arith.constant 0 : index
    %c0_9 = arith.constant 0 : index
    %11 = vector.load %arg9[%c0_7, %c0_8, %c0_9] : memref<8x8x512xf32, #tpu.memory_space<vmem>>, vector<8x8x512xf32>
    tpu.vector_store %arg9[%c0_7, %c0_8, %c0_9], %10 {strides = array<i32>} : memref<8x8x512xf32, #tpu.memory_space<vmem>>, vector<8x8x512xf32>,
    %c0_10 = arith.constant 0 : index
    %c0_11 = arith.constant 0 : index
    %12 = vector.load %arg4[%c0_10, %c0_11] : memref<128x512xf32, #tpu.memory_space<vmem>>, vector<128x512xf32>
    %c0_12 = arith.constant 0 : index
    %c0_13 = arith.constant 0 : index
    %13 = vector.load %arg7[%c0_12, %c0_13] : memref<8x128xf32, #tpu.memory_space<vmem>>, vector<8x128xf32>
    %c0_14 = arith.constant 0 : index
    %c0_15 = arith.constant 0 : index
    %14 = vector.load %arg8[%c0_14, %c0_15] : memref<8x128xf32, #tpu.memory_space<vmem>>, vector<8x128xf32>
    %c0_i32_16 = arith.constant 0 : i32
    %15 = arith.index_cast %c0_i32_16 : i32 to index
    %c0_17 = arith.constant 0 : index
    %c0_18 = arith.constant 0 : index
    %16 = vector.load %arg9[%15, %c0_17, %c0_18] : memref<8x8x512xf32, #tpu.memory_space<vmem>>, vector<1x8x512xf32>
    %17 = vector.shape_cast %16 : vector<1x8x512xf32> to vector<8x512xf32>
    %cst_19 = arith.constant dense<0.000000e+00> : vector<8x512xf32>
    %18 = tpu.matmul %13, %12, %cst_19 {dimension_numbers = #tpu.dot_dimension_numbers<[1], [0], [0], [1], [0, 0, 1, 1], [], []>} : vector<8x128xf32>, vector<128x512xf32>, vector<8x512xf32> -> vector<8x512xf32>
    %19 = arith.addf %17, %18 : vector<8x512xf32>
    %20 = vector.extract_strided_slice %19 {offsets = [0, 0], sizes = [8, 128], strides = [1, 1]} : vector<8x512xf32> to vector<8x128xf32>
    %21 = arith.negf %20 : vector<8x128xf32>
    %22 = math.exp %21 : vector<8x128xf32>
    %cst_20 = arith.constant 1.000000e+00 : f32
    %23 = vector.broadcast %cst_20 : f32 to vector<8x128xf32>
    %24 = arith.addf %23, %22 : vector<8x128xf32>
    %25 = arith.divf %23, %24 : vector<8x128xf32>
    %26 = vector.extract_strided_slice %19 {offsets = [0, 128], sizes = [8, 128], strides = [1, 1]} : vector<8x512xf32> to vector<8x128xf32>
    %27 = arith.negf %26 : vector<8x128xf32>
    %28 = math.exp %27 : vector<8x128xf32>
    %cst_21 = arith.constant 1.000000e+00 : f32
    %29 = vector.broadcast %cst_21 : f32 to vector<8x128xf32>
    %30 = arith.addf %29, %28 : vector<8x128xf32>
    %31 = arith.divf %29, %30 : vector<8x128xf32>
    %32 = vector.extract_strided_slice %19 {offsets = [0, 256], sizes = [8, 128], strides = [1, 1]} : vector<8x512xf32> to vector<8x128xf32>
    %33 = math.tanh %32 : vector<8x128xf32>
    %34 = vector.extract_strided_slice %19 {offsets = [0, 384], sizes = [8, 128], strides = [1, 1]} : vector<8x512xf32> to vector<8x128xf32>
    %35 = arith.negf %34 : vector<8x128xf32>
    %36 = math.exp %35 : vector<8x128xf32>
    %cst_22 = arith.constant 1.000000e+00 : f32
    %37 = vector.broadcast %cst_22 : f32 to vector<8x128xf32>
    %38 = arith.addf %37, %36 : vector<8x128xf32>
    %39 = arith.divf %37, %38 : vector<8x128xf32>
    %40 = arith.mulf %31, %14 : vector<8x128xf32>
    %41 = arith.mulf %25, %33 : vector<8x128xf32>
    %42 = arith.addf %40, %41 : vector<8x128xf32>
    %43 = math.tanh %42 : vector<8x128xf32>
    %44 = arith.mulf %39, %43 : vector<8x128xf32>
    %45 = arith.index_cast %c0_i32_16 : i32 to index
    %c0_23 = arith.constant 0 : index
    %c0_24 = arith.constant 0 : index
    %46 = vector.load %arg10[%45, %c0_23, %c0_24] : memref<8x8x128xf32, #tpu.memory_space<vmem>>, vector<1x8x128xf32>
    %47 = vector.shape_cast %46 : vector<1x8x128xf32> to vector<8x128xf32>
    %48 = vector.shape_cast %44 : vector<8x128xf32> to vector<1x8x128xf32>
    tpu.vector_store %arg10[%45, %c0_23, %c0_24], %48 {strides = array<i32>} : memref<8x8x128xf32, #tpu.memory_space<vmem>>, vector<1x8x128xf32>,
    %c1_i32 = arith.constant 1 : i32
    %49 = arith.index_cast %c1_i32 : i32 to index
    %c0_25 = arith.constant 0 : index
    %c0_26 = arith.constant 0 : index
    %50 = vector.load %arg9[%49, %c0_25, %c0_26] : memref<8x8x512xf32, #tpu.memory_space<vmem>>, vector<1x8x512xf32>
    %51 = vector.shape_cast %50 : vector<1x8x512xf32> to vector<8x512xf32>
    %cst_27 = arith.constant dense<0.000000e+00> : vector<8x512xf32>
    %52 = tpu.matmul %44, %12, %cst_27 {dimension_numbers = #tpu.dot_dimension_numbers<[1], [0], [0], [1], [0, 0, 1, 1], [], []>} : vector<8x128xf32>, vector<128x512xf32>, vector<8x512xf32> -> vector<8x512xf32>
    %53 = arith.addf %51, %52 : vector<8x512xf32>
    %54 = vector.extract_strided_slice %53 {offsets = [0, 0], sizes = [8, 128], strides = [1, 1]} : vector<8x512xf32> to vector<8x128xf32>
    %55 = arith.negf %54 : vector<8x128xf32>
    %56 = math.exp %55 : vector<8x128xf32>
    %cst_28 = arith.constant 1.000000e+00 : f32
    %57 = vector.broadcast %cst_28 : f32 to vector<8x128xf32>
    %58 = arith.addf %57, %56 : vector<8x128xf32>
    %59 = arith.divf %57, %58 : vector<8x128xf32>
    %60 = vector.extract_strided_slice %53 {offsets = [0, 128], sizes = [8, 128], strides = [1, 1]} : vector<8x512xf32> to vector<8x128xf32>
    %61 = arith.negf %60 : vector<8x128xf32>
    %62 = math.exp %61 : vector<8x128xf32>
    %cst_29 = arith.constant 1.000000e+00 : f32
    %63 = vector.broadcast %cst_29 : f32 to vector<8x128xf32>
    %64 = arith.addf %63, %62 : vector<8x128xf32>
    %65 = arith.divf %63, %64 : vector<8x128xf32>
    %66 = vector.extract_strided_slice %53 {offsets = [0, 256], sizes = [8, 128], strides = [1, 1]} : vector<8x512xf32> to vector<8x128xf32>
    %67 = math.tanh %66 : vector<8x128xf32>
    %68 = vector.extract_strided_slice %53 {offsets = [0, 384], sizes = [8, 128], strides = [1, 1]} : vector<8x512xf32> to vector<8x128xf32>
    %69 = arith.negf %68 : vector<8x128xf32>
    %70 = math.exp %69 : vector<8x128xf32>
    %cst_30 = arith.constant 1.000000e+00 : f32
    %71 = vector.broadcast %cst_30 : f32 to vector<8x128xf32>
    %72 = arith.addf %71, %70 : vector<8x128xf32>
    %73 = arith.divf %71, %72 : vector<8x128xf32>
    %74 = arith.mulf %65, %42 : vector<8x128xf32>
    %75 = arith.mulf %59, %67 : vector<8x128xf32>
    %76 = arith.addf %74, %75 : vector<8x128xf32>
    %77 = math.tanh %76 : vector<8x128xf32>
    %78 = arith.mulf %73, %77 : vector<8x128xf32>
    %79 = arith.index_cast %c1_i32 : i32 to index
    %c0_31 = arith.constant 0 : index
    %c0_32 = arith.constant 0 : index
    %80 = vector.load %arg10[%79, %c0_31, %c0_32] : memref<8x8x128xf32, #tpu.memory_space<vmem>>, vector<1x8x128xf32>
    %81 = vector.shape_cast %80 : vector<1x8x128xf32> to vector<8x128xf32>
    %82 = vector.shape_cast %78 : vector<8x128xf32> to vector<1x8x128xf32>
    tpu.vector_store %arg10[%79, %c0_31, %c0_32], %82 {strides = array<i32>} : memref<8x8x128xf32, #tpu.memory_space<vmem>>, vector<1x8x128xf32>,
    %c2_i32 = arith.constant 2 : i32
    %83 = arith.index_cast %c2_i32 : i32 to index
    %c0_33 = arith.constant 0 : index
    %c0_34 = arith.constant 0 : index
    %84 = vector.load %arg9[%83, %c0_33, %c0_34] : memref<8x8x512xf32, #tpu.memory_space<vmem>>, vector<1x8x512xf32>
    %85 = vector.shape_cast %84 : vector<1x8x512xf32> to vector<8x512xf32>
    %cst_35 = arith.constant dense<0.000000e+00> : vector<8x512xf32>
    %86 = tpu.matmul %78, %12, %cst_35 {dimension_numbers = #tpu.dot_dimension_numbers<[1], [0], [0], [1], [0, 0, 1, 1], [], []>} : vector<8x128xf32>, vector<128x512xf32>, vector<8x512xf32> -> vector<8x512xf32>
    %87 = arith.addf %85, %86 : vector<8x512xf32>
    %88 = vector.extract_strided_slice %87 {offsets = [0, 0], sizes = [8, 128], strides = [1, 1]} : vector<8x512xf32> to vector<8x128xf32>
    %89 = arith.negf %88 : vector<8x128xf32>
    %90 = math.exp %89 : vector<8x128xf32>
    %cst_36 = arith.constant 1.000000e+00 : f32
    %91 = vector.broadcast %cst_36 : f32 to vector<8x128xf32>
    %92 = arith.addf %91, %90 : vector<8x128xf32>
    %93 = arith.divf %91, %92 : vector<8x128xf32>
    %94 = vector.extract_strided_slice %87 {offsets = [0, 128], sizes = [8, 128], strides = [1, 1]} : vector<8x512xf32> to vector<8x128xf32>
    %95 = arith.negf %94 : vector<8x128xf32>
    %96 = math.exp %95 : vector<8x128xf32>
    %cst_37 = arith.constant 1.000000e+00 : f32
    %97 = vector.broadcast %cst_37 : f32 to vector<8x128xf32>
    %98 = arith.addf %97, %96 : vector<8x128xf32>
    %99 = arith.divf %97, %98 : vector<8x128xf32>
    %100 = vector.extract_strided_slice %87 {offsets = [0, 256], sizes = [8, 128], strides = [1, 1]} : vector<8x512xf32> to vector<8x128xf32>
    %101 = math.tanh %100 : vector<8x128xf32>
    %102 = vector.extract_strided_slice %87 {offsets = [0, 384], sizes = [8, 128], strides = [1, 1]} : vector<8x512xf32> to vector<8x128xf32>
    %103 = arith.negf %102 : vector<8x128xf32>
    %104 = math.exp %103 : vector<8x128xf32>
    %cst_38 = arith.constant 1.000000e+00 : f32
    %105 = vector.broadcast %cst_38 : f32 to vector<8x128xf32>
    %106 = arith.addf %105, %104 : vector<8x128xf32>
    %107 = arith.divf %105, %106 : vector<8x128xf32>
    %108 = arith.mulf %99, %76 : vector<8x128xf32>
    %109 = arith.mulf %93, %101 : vector<8x128xf32>
    %110 = arith.addf %108, %109 : vector<8x128xf32>
    %111 = math.tanh %110 : vector<8x128xf32>
    %112 = arith.mulf %107, %111 : vector<8x128xf32>
    %113 = arith.index_cast %c2_i32 : i32 to index
    %c0_39 = arith.constant 0 : index
    %c0_40 = arith.constant 0 : index
    %114 = vector.load %arg10[%113, %c0_39, %c0_40] : memref<8x8x128xf32, #tpu.memory_space<vmem>>, vector<1x8x128xf32>
    %115 = vector.shape_cast %114 : vector<1x8x128xf32> to vector<8x128xf32>
    %116 = vector.shape_cast %112 : vector<8x128xf32> to vector<1x8x128xf32>
    tpu.vector_store %arg10[%113, %c0_39, %c0_40], %116 {strides = array<i32>} : memref<8x8x128xf32, #tpu.memory_space<vmem>>, vector<1x8x128xf32>,
    %c3_i32 = arith.constant 3 : i32
    %117 = arith.index_cast %c3_i32 : i32 to index
    %c0_41 = arith.constant 0 : index
    %c0_42 = arith.constant 0 : index
    %118 = vector.load %arg9[%117, %c0_41, %c0_42] : memref<8x8x512xf32, #tpu.memory_space<vmem>>, vector<1x8x512xf32>
    %119 = vector.shape_cast %118 : vector<1x8x512xf32> to vector<8x512xf32>
    %cst_43 = arith.constant dense<0.000000e+00> : vector<8x512xf32>
    %120 = tpu.matmul %112, %12, %cst_43 {dimension_numbers = #tpu.dot_dimension_numbers<[1], [0], [0], [1], [0, 0, 1, 1], [], []>} : vector<8x128xf32>, vector<128x512xf32>, vector<8x512xf32> -> vector<8x512xf32>
    %121 = arith.addf %119, %120 : vector<8x512xf32>
    %122 = vector.extract_strided_slice %121 {offsets = [0, 0], sizes = [8, 128], strides = [1, 1]} : vector<8x512xf32> to vector<8x128xf32>
    %123 = arith.negf %122 : vector<8x128xf32>
    %124 = math.exp %123 : vector<8x128xf32>
    %cst_44 = arith.constant 1.000000e+00 : f32
    %125 = vector.broadcast %cst_44 : f32 to vector<8x128xf32>
    %126 = arith.addf %125, %124 : vector<8x128xf32>
    %127 = arith.divf %125, %126 : vector<8x128xf32>
    %128 = vector.extract_strided_slice %121 {offsets = [0, 128], sizes = [8, 128], strides = [1, 1]} : vector<8x512xf32> to vector<8x128xf32>
    %129 = arith.negf %128 : vector<8x128xf32>
    %130 = math.exp %129 : vector<8x128xf32>
    %cst_45 = arith.constant 1.000000e+00 : f32
    %131 = vector.broadcast %cst_45 : f32 to vector<8x128xf32>
    %132 = arith.addf %131, %130 : vector<8x128xf32>
    %133 = arith.divf %131, %132 : vector<8x128xf32>
    %134 = vector.extract_strided_slice %121 {offsets = [0, 256], sizes = [8, 128], strides = [1, 1]} : vector<8x512xf32> to vector<8x128xf32>
    %135 = math.tanh %134 : vector<8x128xf32>
    %136 = vector.extract_strided_slice %121 {offsets = [0, 384], sizes = [8, 128], strides = [1, 1]} : vector<8x512xf32> to vector<8x128xf32>
    %137 = arith.negf %136 : vector<8x128xf32>
    %138 = math.exp %137 : vector<8x128xf32>
    %cst_46 = arith.constant 1.000000e+00 : f32
    %139 = vector.broadcast %cst_46 : f32 to vector<8x128xf32>
    %140 = arith.addf %139, %138 : vector<8x128xf32>
    %141 = arith.divf %139, %140 : vector<8x128xf32>
    %142 = arith.mulf %133, %110 : vector<8x128xf32>
    %143 = arith.mulf %127, %135 : vector<8x128xf32>
    %144 = arith.addf %142, %143 : vector<8x128xf32>
    %145 = math.tanh %144 : vector<8x128xf32>
    %146 = arith.mulf %141, %145 : vector<8x128xf32>
    %147 = arith.index_cast %c3_i32 : i32 to index
    %c0_47 = arith.constant 0 : index
    %c0_48 = arith.constant 0 : index
    %148 = vector.load %arg10[%147, %c0_47, %c0_48] : memref<8x8x128xf32, #tpu.memory_space<vmem>>, vector<1x8x128xf32>
    %149 = vector.shape_cast %148 : vector<1x8x128xf32> to vector<8x128xf32>
    %150 = vector.shape_cast %146 : vector<8x128xf32> to vector<1x8x128xf32>
    tpu.vector_store %arg10[%147, %c0_47, %c0_48], %150 {strides = array<i32>} : memref<8x8x128xf32, #tpu.memory_space<vmem>>, vector<1x8x128xf32>,
    %c4_i32 = arith.constant 4 : i32
    %151 = arith.index_cast %c4_i32 : i32 to index
    %c0_49 = arith.constant 0 : index
    %c0_50 = arith.constant 0 : index
    %152 = vector.load %arg9[%151, %c0_49, %c0_50] : memref<8x8x512xf32, #tpu.memory_space<vmem>>, vector<1x8x512xf32>
    %153 = vector.shape_cast %152 : vector<1x8x512xf32> to vector<8x512xf32>
    %cst_51 = arith.constant dense<0.000000e+00> : vector<8x512xf32>
    %154 = tpu.matmul %146, %12, %cst_51 {dimension_numbers = #tpu.dot_dimension_numbers<[1], [0], [0], [1], [0, 0, 1, 1], [], []>} : vector<8x128xf32>, vector<128x512xf32>, vector<8x512xf32> -> vector<8x512xf32>
    %155 = arith.addf %153, %154 : vector<8x512xf32>
    %156 = vector.extract_strided_slice %155 {offsets = [0, 0], sizes = [8, 128], strides = [1, 1]} : vector<8x512xf32> to vector<8x128xf32>
    %157 = arith.negf %156 : vector<8x128xf32>
    %158 = math.exp %157 : vector<8x128xf32>
    %cst_52 = arith.constant 1.000000e+00 : f32
    %159 = vector.broadcast %cst_52 : f32 to vector<8x128xf32>
    %160 = arith.addf %159, %158 : vector<8x128xf32>
    %161 = arith.divf %159, %160 : vector<8x128xf32>
    %162 = vector.extract_strided_slice %155 {offsets = [0, 128], sizes = [8, 128], strides = [1, 1]} : vector<8x512xf32> to vector<8x128xf32>
    %163 = arith.negf %162 : vector<8x128xf32>
    %164 = math.exp %163 : vector<8x128xf32>
    %cst_53 = arith.constant 1.000000e+00 : f32
    %165 = vector.broadcast %cst_53 : f32 to vector<8x128xf32>
    %166 = arith.addf %165, %164 : vector<8x128xf32>
    %167 = arith.divf %165, %166 : vector<8x128xf32>
    %168 = vector.extract_strided_slice %155 {offsets = [0, 256], sizes = [8, 128], strides = [1, 1]} : vector<8x512xf32> to vector<8x128xf32>
    %169 = math.tanh %168 : vector<8x128xf32>
    %170 = vector.extract_strided_slice %155 {offsets = [0, 384], sizes = [8, 128], strides = [1, 1]} : vector<8x512xf32> to vector<8x128xf32>
    %171 = arith.negf %170 : vector<8x128xf32>
    %172 = math.exp %171 : vector<8x128xf32>
    %cst_54 = arith.constant 1.000000e+00 : f32
    %173 = vector.broadcast %cst_54 : f32 to vector<8x128xf32>
    %174 = arith.addf %173, %172 : vector<8x128xf32>
    %175 = arith.divf %173, %174 : vector<8x128xf32>
    %176 = arith.mulf %167, %144 : vector<8x128xf32>
    %177 = arith.mulf %161, %169 : vector<8x128xf32>
    %178 = arith.addf %176, %177 : vector<8x128xf32>
    %179 = math.tanh %178 : vector<8x128xf32>
    %180 = arith.mulf %175, %179 : vector<8x128xf32>
    %181 = arith.index_cast %c4_i32 : i32 to index
    %c0_55 = arith.constant 0 : index
    %c0_56 = arith.constant 0 : index
    %182 = vector.load %arg10[%181, %c0_55, %c0_56] : memref<8x8x128xf32, #tpu.memory_space<vmem>>, vector<1x8x128xf32>
    %183 = vector.shape_cast %182 : vector<1x8x128xf32> to vector<8x128xf32>
    %184 = vector.shape_cast %180 : vector<8x128xf32> to vector<1x8x128xf32>
    tpu.vector_store %arg10[%181, %c0_55, %c0_56], %184 {strides = array<i32>} : memref<8x8x128xf32, #tpu.memory_space<vmem>>, vector<1x8x128xf32>,
    %c5_i32 = arith.constant 5 : i32
    %185 = arith.index_cast %c5_i32 : i32 to index
    %c0_57 = arith.constant 0 : index
    %c0_58 = arith.constant 0 : index
    %186 = vector.load %arg9[%185, %c0_57, %c0_58] : memref<8x8x512xf32, #tpu.memory_space<vmem>>, vector<1x8x512xf32>
    %187 = vector.shape_cast %186 : vector<1x8x512xf32> to vector<8x512xf32>
    %cst_59 = arith.constant dense<0.000000e+00> : vector<8x512xf32>
    %188 = tpu.matmul %180, %12, %cst_59 {dimension_numbers = #tpu.dot_dimension_numbers<[1], [0], [0], [1], [0, 0, 1, 1], [], []>} : vector<8x128xf32>, vector<128x512xf32>, vector<8x512xf32> -> vector<8x512xf32>
    %189 = arith.addf %187, %188 : vector<8x512xf32>
    %190 = vector.extract_strided_slice %189 {offsets = [0, 0], sizes = [8, 128], strides = [1, 1]} : vector<8x512xf32> to vector<8x128xf32>
    %191 = arith.negf %190 : vector<8x128xf32>
    %192 = math.exp %191 : vector<8x128xf32>
    %cst_60 = arith.constant 1.000000e+00 : f32
    %193 = vector.broadcast %cst_60 : f32 to vector<8x128xf32>
    %194 = arith.addf %193, %192 : vector<8x128xf32>
    %195 = arith.divf %193, %194 : vector<8x128xf32>
    %196 = vector.extract_strided_slice %189 {offsets = [0, 128], sizes = [8, 128], strides = [1, 1]} : vector<8x512xf32> to vector<8x128xf32>
    %197 = arith.negf %196 : vector<8x128xf32>
    %198 = math.exp %197 : vector<8x128xf32>
    %cst_61 = arith.constant 1.000000e+00 : f32
    %199 = vector.broadcast %cst_61 : f32 to vector<8x128xf32>
    %200 = arith.addf %199, %198 : vector<8x128xf32>
    %201 = arith.divf %199, %200 : vector<8x128xf32>
    %202 = vector.extract_strided_slice %189 {offsets = [0, 256], sizes = [8, 128], strides = [1, 1]} : vector<8x512xf32> to vector<8x128xf32>
    %203 = math.tanh %202 : vector<8x128xf32>
    %204 = vector.extract_strided_slice %189 {offsets = [0, 384], sizes = [8, 128], strides = [1, 1]} : vector<8x512xf32> to vector<8x128xf32>
    %205 = arith.negf %204 : vector<8x128xf32>
    %206 = math.exp %205 : vector<8x128xf32>
    %cst_62 = arith.constant 1.000000e+00 : f32
    %207 = vector.broadcast %cst_62 : f32 to vector<8x128xf32>
    %208 = arith.addf %207, %206 : vector<8x128xf32>
    %209 = arith.divf %207, %208 : vector<8x128xf32>
    %210 = arith.mulf %201, %178 : vector<8x128xf32>
    %211 = arith.mulf %195, %203 : vector<8x128xf32>
    %212 = arith.addf %210, %211 : vector<8x128xf32>
    %213 = math.tanh %212 : vector<8x128xf32>
    %214 = arith.mulf %209, %213 : vector<8x128xf32>
    %215 = arith.index_cast %c5_i32 : i32 to index
    %c0_63 = arith.constant 0 : index
    %c0_64 = arith.constant 0 : index
    %216 = vector.load %arg10[%215, %c0_63, %c0_64] : memref<8x8x128xf32, #tpu.memory_space<vmem>>, vector<1x8x128xf32>
    %217 = vector.shape_cast %216 : vector<1x8x128xf32> to vector<8x128xf32>
    %218 = vector.shape_cast %214 : vector<8x128xf32> to vector<1x8x128xf32>
    tpu.vector_store %arg10[%215, %c0_63, %c0_64], %218 {strides = array<i32>} : memref<8x8x128xf32, #tpu.memory_space<vmem>>, vector<1x8x128xf32>,
    %c6_i32 = arith.constant 6 : i32
    %219 = arith.index_cast %c6_i32 : i32 to index
    %c0_65 = arith.constant 0 : index
    %c0_66 = arith.constant 0 : index
    %220 = vector.load %arg9[%219, %c0_65, %c0_66] : memref<8x8x512xf32, #tpu.memory_space<vmem>>, vector<1x8x512xf32>
    %221 = vector.shape_cast %220 : vector<1x8x512xf32> to vector<8x512xf32>
    %cst_67 = arith.constant dense<0.000000e+00> : vector<8x512xf32>
    %222 = tpu.matmul %214, %12, %cst_67 {dimension_numbers = #tpu.dot_dimension_numbers<[1], [0], [0], [1], [0, 0, 1, 1], [], []>} : vector<8x128xf32>, vector<128x512xf32>, vector<8x512xf32> -> vector<8x512xf32>
    %223 = arith.addf %221, %222 : vector<8x512xf32>
    %224 = vector.extract_strided_slice %223 {offsets = [0, 0], sizes = [8, 128], strides = [1, 1]} : vector<8x512xf32> to vector<8x128xf32>
    %225 = arith.negf %224 : vector<8x128xf32>
    %226 = math.exp %225 : vector<8x128xf32>
    %cst_68 = arith.constant 1.000000e+00 : f32
    %227 = vector.broadcast %cst_68 : f32 to vector<8x128xf32>
    %228 = arith.addf %227, %226 : vector<8x128xf32>
    %229 = arith.divf %227, %228 : vector<8x128xf32>
    %230 = vector.extract_strided_slice %223 {offsets = [0, 128], sizes = [8, 128], strides = [1, 1]} : vector<8x512xf32> to vector<8x128xf32>
    %231 = arith.negf %230 : vector<8x128xf32>
    %232 = math.exp %231 : vector<8x128xf32>
    %cst_69 = arith.constant 1.000000e+00 : f32
    %233 = vector.broadcast %cst_69 : f32 to vector<8x128xf32>
    %234 = arith.addf %233, %232 : vector<8x128xf32>
    %235 = arith.divf %233, %234 : vector<8x128xf32>
    %236 = vector.extract_strided_slice %223 {offsets = [0, 256], sizes = [8, 128], strides = [1, 1]} : vector<8x512xf32> to vector<8x128xf32>
    %237 = math.tanh %236 : vector<8x128xf32>
    %238 = vector.extract_strided_slice %223 {offsets = [0, 384], sizes = [8, 128], strides = [1, 1]} : vector<8x512xf32> to vector<8x128xf32>
    %239 = arith.negf %238 : vector<8x128xf32>
    %240 = math.exp %239 : vector<8x128xf32>
    %cst_70 = arith.constant 1.000000e+00 : f32
    %241 = vector.broadcast %cst_70 : f32 to vector<8x128xf32>
    %242 = arith.addf %241, %240 : vector<8x128xf32>
    %243 = arith.divf %241, %242 : vector<8x128xf32>
    %244 = arith.mulf %235, %212 : vector<8x128xf32>
    %245 = arith.mulf %229, %237 : vector<8x128xf32>
    %246 = arith.addf %244, %245 : vector<8x128xf32>
    %247 = math.tanh %246 : vector<8x128xf32>
    %248 = arith.mulf %243, %247 : vector<8x128xf32>
    %249 = arith.index_cast %c6_i32 : i32 to index
    %c0_71 = arith.constant 0 : index
    %c0_72 = arith.constant 0 : index
    %250 = vector.load %arg10[%249, %c0_71, %c0_72] : memref<8x8x128xf32, #tpu.memory_space<vmem>>, vector<1x8x128xf32>
    %251 = vector.shape_cast %250 : vector<1x8x128xf32> to vector<8x128xf32>
    %252 = vector.shape_cast %248 : vector<8x128xf32> to vector<1x8x128xf32>
    tpu.vector_store %arg10[%249, %c0_71, %c0_72], %252 {strides = array<i32>} : memref<8x8x128xf32, #tpu.memory_space<vmem>>, vector<1x8x128xf32>,
    %c7_i32 = arith.constant 7 : i32
    %253 = arith.index_cast %c7_i32 : i32 to index
    %c0_73 = arith.constant 0 : index
    %c0_74 = arith.constant 0 : index
    %254 = vector.load %arg9[%253, %c0_73, %c0_74] : memref<8x8x512xf32, #tpu.memory_space<vmem>>, vector<1x8x512xf32>
    %255 = vector.shape_cast %254 : vector<1x8x512xf32> to vector<8x512xf32>
    %cst_75 = arith.constant dense<0.000000e+00> : vector<8x512xf32>
    %256 = tpu.matmul %248, %12, %cst_75 {dimension_numbers = #tpu.dot_dimension_numbers<[1], [0], [0], [1], [0, 0, 1, 1], [], []>} : vector<8x128xf32>, vector<128x512xf32>, vector<8x512xf32> -> vector<8x512xf32>
    %257 = arith.addf %255, %256 : vector<8x512xf32>
    %258 = vector.extract_strided_slice %257 {offsets = [0, 0], sizes = [8, 128], strides = [1, 1]} : vector<8x512xf32> to vector<8x128xf32>
    %259 = arith.negf %258 : vector<8x128xf32>
    %260 = math.exp %259 : vector<8x128xf32>
    %cst_76 = arith.constant 1.000000e+00 : f32
    %261 = vector.broadcast %cst_76 : f32 to vector<8x128xf32>
    %262 = arith.addf %261, %260 : vector<8x128xf32>
    %263 = arith.divf %261, %262 : vector<8x128xf32>
    %264 = vector.extract_strided_slice %257 {offsets = [0, 128], sizes = [8, 128], strides = [1, 1]} : vector<8x512xf32> to vector<8x128xf32>
    %265 = arith.negf %264 : vector<8x128xf32>
    %266 = math.exp %265 : vector<8x128xf32>
    %cst_77 = arith.constant 1.000000e+00 : f32
    %267 = vector.broadcast %cst_77 : f32 to vector<8x128xf32>
    %268 = arith.addf %267, %266 : vector<8x128xf32>
    %269 = arith.divf %267, %268 : vector<8x128xf32>
    %270 = vector.extract_strided_slice %257 {offsets = [0, 256], sizes = [8, 128], strides = [1, 1]} : vector<8x512xf32> to vector<8x128xf32>
    %271 = math.tanh %270 : vector<8x128xf32>
    %272 = vector.extract_strided_slice %257 {offsets = [0, 384], sizes = [8, 128], strides = [1, 1]} : vector<8x512xf32> to vector<8x128xf32>
    %273 = arith.negf %272 : vector<8x128xf32>
    %274 = math.exp %273 : vector<8x128xf32>
    %cst_78 = arith.constant 1.000000e+00 : f32
    %275 = vector.broadcast %cst_78 : f32 to vector<8x128xf32>
    %276 = arith.addf %275, %274 : vector<8x128xf32>
    %277 = arith.divf %275, %276 : vector<8x128xf32>
    %278 = arith.mulf %269, %246 : vector<8x128xf32>
    %279 = arith.mulf %263, %271 : vector<8x128xf32>
    %280 = arith.addf %278, %279 : vector<8x128xf32>
    %281 = math.tanh %280 : vector<8x128xf32>
    %282 = arith.mulf %277, %281 : vector<8x128xf32>
    %283 = arith.index_cast %c7_i32 : i32 to index
    %c0_79 = arith.constant 0 : index
    %c0_80 = arith.constant 0 : index
    %284 = vector.load %arg10[%283, %c0_79, %c0_80] : memref<8x8x128xf32, #tpu.memory_space<vmem>>, vector<1x8x128xf32>
    %285 = vector.shape_cast %284 : vector<1x8x128xf32> to vector<8x128xf32>
    %286 = vector.shape_cast %282 : vector<8x128xf32> to vector<1x8x128xf32>
    tpu.vector_store %arg10[%283, %c0_79, %c0_80], %286 {strides = array<i32>} : memref<8x8x128xf32, #tpu.memory_space<vmem>>, vector<1x8x128xf32>,
    %c8_i32 = arith.constant 8 : i32
    %c0_81 = arith.constant 0 : index
    %c0_82 = arith.constant 0 : index
    %287 = vector.load %arg7[%c0_81, %c0_82] : memref<8x128xf32, #tpu.memory_space<vmem>>, vector<8x128xf32>
    tpu.vector_store %arg7[%c0_81, %c0_82], %282 {strides = array<i32>} : memref<8x128xf32, #tpu.memory_space<vmem>>, vector<8x128xf32>,
    %c0_83 = arith.constant 0 : index
    %c0_84 = arith.constant 0 : index
    %288 = vector.load %arg8[%c0_83, %c0_84] : memref<8x128xf32, #tpu.memory_space<vmem>>, vector<8x128xf32>
    tpu.vector_store %arg8[%c0_83, %c0_84], %280 {strides = array<i32>} : memref<8x128xf32, #tpu.memory_space<vmem>>, vector<8x128xf32>,
    %c0_85 = arith.constant 0 : index
    %c0_86 = arith.constant 0 : index
    %c0_87 = arith.constant 0 : index
    %289 = vector.load %arg10[%c0_85, %c0_86, %c0_87] : memref<8x8x128xf32, #tpu.memory_space<vmem>>, vector<8x8x128xf32>
    %290 = tpu.transpose %289, [1, 0, 2] : vector<8x8x128xf32> -> vector<8x8x128xf32>
    %291 = vector.extract_strided_slice %290 {offsets = [0, 0, 0], sizes = [8, 8, 32], strides = [1, 1, 1]} : vector<8x8x128xf32> to vector<8x8x32xf32>
    %c0_88 = arith.constant 0 : index
    %c0_89 = arith.constant 0 : index
    %c0_90 = arith.constant 0 : index
    %292 = vector.load %arg6[%c0_88, %c0_89, %c0_90] : memref<8x8x32xf32, #tpu.memory_space<vmem>>, vector<8x8x32xf32>
    tpu.vector_store %arg6[%c0_88, %c0_89, %c0_90], %291 {strides = array<i32>} : memref<8x8x32xf32, #tpu.memory_space<vmem>>, vector<8x8x32xf32>,
    return
  }
  func.func @transform_0(%arg0: i32, %arg1: i32) -> (i32, i32, i32) {
    %c0_i32 = arith.constant 0 : i32
    %c0_i32_0 = arith.constant 0 : i32
    return %arg1, %arg0, %c0_i32 : i32, i32, i32
  }
  func.func @transform_1(%arg0: i32, %arg1: i32) -> (i32, i32) {
    %c0_i32 = arith.constant 0 : i32
    %c0_i32_0 = arith.constant 0 : i32
    %c0_i32_1 = arith.constant 0 : i32
    return %c0_i32, %c0_i32_0 : i32, i32
  }
  func.func @transform_2(%arg0: i32, %arg1: i32) -> (i32, i32) {
    %c0_i32 = arith.constant 0 : i32
    %c0_i32_0 = arith.constant 0 : i32
    %c0_i32_1 = arith.constant 0 : i32
    return %c0_i32, %c0_i32_0 : i32, i32
  }
  func.func @transform_3(%arg0: i32, %arg1: i32) -> (i32, i32) {
    %c0_i32 = arith.constant 0 : i32
    %c0_i32_0 = arith.constant 0 : i32
    %c0_i32_1 = arith.constant 0 : i32
    return %c0_i32, %c0_i32_0 : i32, i32
  }
  func.func @transform_4(%arg0: i32, %arg1: i32) -> (i32, i32, i32) {
    %c0_i32 = arith.constant 0 : i32
    %c0_i32_0 = arith.constant 0 : i32
    return %arg0, %arg1, %c0_i32 : i32, i32, i32
  }
}

</mosaic_0001>

<llo_original>
// kernel: tpu_custom_call.1
$region0: #{tpu_custom_call.1}
  #allocation0 [shape = 'u32[]', space=smem, size = 0x4, offset = 0x4, fixed_abs, tag = 'smem constant byte address 0x4 - core index']
  #allocation1 [shape = 'u32[144,128]{1,0:T(1,128)}', space=vmem, size = 0x12000, scoped, tag = 'internal scratch']
  #allocation2 [shape = 'f32[8,128]{1,0:T(8,128)}', space=vmem, size = 0x1000, scoped, tag = 'scratch operand']
  #allocation3 [shape = 'f32[8,128]{1,0:T(8,128)}', space=vmem, size = 0x1000, scoped, tag = 'scratch operand']
  #allocation4 [shape = 'f32[8,8,512]{2,1,0:T(8,128)}', space=vmem, size = 0x20000, scoped, tag = 'scratch operand']
  #allocation5 [shape = 'f32[8,8,128]{2,1,0:T(8,128)}', space=vmem, size = 0x8000, scoped, tag = 'scratch operand']
  %s0 = inlined_call_operand.vmem [shape: f32[8,8,4], index: 0, kind: input, shape index: {}]
  %s1 = inlined_call_operand.vmem [shape: f32[4,512], index: 1, kind: input, shape index: {}]
  %s2 = inlined_call_operand.hbm [shape: f32[128,512], index: 2, kind: input, shape index: {}]
  %s3 = inlined_call_operand.vmem [shape: f32[1,512], index: 3, kind: input, shape index: {}]
  %s4 = inlined_call_operand.hbm [shape: f32[8,8,32], index: 4, kind: output, shape index: {}]
  %s5 = sld [smem:[#allocation0]]
  $region34: #{tpu_custom_call.1} parent=0
    _
  %s7 = ssub.s32 1, %s5
  %s8 = scalar_select 0, %s7, %s5
  $region1: #{tpu_custom_call.1} parent=0
    #allocation6 [shape = 'u8[262144]{0}', space=vmem, size = 0x40000, scoped, tag = 'input window, operand 2, single buffered']
    #allocation7 [shape = 's32[1]{0}', space=sflag, size = 0x4, scoped, tag = 'scoped memory for tpu_custom_call.1']
    #allocation8 [shape = 's32[1]{0}', space=sflag, size = 0x4, scoped, tag = 'scoped memory for tpu_custom_call.1']
    #allocation9 [shape = 'u8[32768]{0}', space=vmem, size = 0x8000, scoped, tag = 'output window, operand 0, single buffered']
    %9 = vsyncpa [#allocation7], 0
    %10 = vsyncpa [#allocation8], 0
    // Predicated region
    $region2: #{tpu_custom_call.1} parent=1 // pred_check
      _
    $region3: #{tpu_custom_call.1} parent=1 // pred_check_branch
      %12 = sbr.rel (0) target = $region5
    $region4: #{tpu_custom_call.1} parent=1 // pred_region
      _
    $region5: #{tpu_custom_call.1} parent=1 // pred_fallthru
      _
    // Predicated region
    $region6: #{tpu_custom_call.1} parent=1 // pred_check
      _
    $region7: #{tpu_custom_call.1} parent=1 // pred_check_branch
      %14 = sbr.rel (0) target = $region9
    $region8: #{tpu_custom_call.1} parent=1 // pred_region
      _
    $region9: #{tpu_custom_call.1} parent=1 // pred_fallthru
      _
    // Predicated region
    $region10: #{tpu_custom_call.1} parent=1 // pred_check
      _
    $region11: #{tpu_custom_call.1} parent=1 // pred_check_branch
      %16 = sbr.rel (0) target = $region13
    $region12: #{tpu_custom_call.1} parent=1 // pred_region
      %s18 = ssub.s32 8192, 8192
      %19 = vsyncadd [#allocation7], %s18
      %s20 = sshll.u32 [#allocation6], 4
      %s21 = int_to_ptr.vmem [resolvable:$true] %s20
      %26 = dma.hbm_to_vmem [thread:$0]  %s2, 8192, %s21, [#allocation7], 512, 512, 32
    $region13: #{tpu_custom_call.1} parent=1 // pred_fallthru
      _
    // Predicated region
    $region14: #{tpu_custom_call.1} parent=1 // pred_check
      _
    $region15: #{tpu_custom_call.1} parent=1 // pred_check_branch
      %28 = sbr.rel (0) target = $region17
    $region16: #{tpu_custom_call.1} parent=1 // pred_region
      _
    $region17: #{tpu_custom_call.1} parent=1 // pred_fallthru
      _
    // Predicated region
    $region18: #{tpu_custom_call.1} parent=1 // pred_check
      _
    $region19: #{tpu_custom_call.1} parent=1 // pred_check_branch
      %30 = sbr.rel (0) target = $region21
    $region20: #{tpu_custom_call.1} parent=1 // pred_region
      %31 = dma.done [#allocation7], 8192
    $region21: #{tpu_custom_call.1} parent=1 // pred_fallthru
      _
    %p32 = scmp.eq.s32.totalorder 0, 0
    // Predicated region
    $region22: #{tpu_custom_call.1} parent=1 // pred_check
      %p33 = pneg %p32
    $region23: #{tpu_custom_call.1} parent=1 // pred_check_branch
      %35 = sbr.rel (%p33) target = $region25
    $region24: #{tpu_custom_call.1} parent=1 // pred_region
      %36 = vst [vmem:[#allocation2] sm:$0xff] 0.0
      %37 = vst [vmem:[#allocation3] sm:$0xff] 0.0
    $region25: #{tpu_custom_call.1} parent=1 // pred_fallthru
      _
    %v38 = vld [vmem:[%s0] sm:$0xff]
    %v39 = vld [vmem:[%s0 + $0x8] sm:$0xff]
    %v40 = vld [vmem:[%s0 + $0x10] sm:$0xff]
    %v41 = vld [vmem:[%s0 + $0x18] sm:$0xff]
    %v42 = vld [vmem:[%s0 + $0x20] sm:$0xff]
    %v43 = vld [vmem:[%s0 + $0x28] sm:$0xff]
    %v44 = vld [vmem:[%s0 + $0x30] sm:$0xff]
    %v45 = vld [vmem:[%s0 + $0x38] sm:$0xff]
    %v46 = vld [vmem:[%s1] sm:$0xff]
    %v47 = vld [vmem:[%s1 + $0x8] sm:$0xff]
    %v48 = vld [vmem:[%s3] sm:$0xf]
    %v50 = vlaneseq
    %v51 = vshrl.u32 %v50, 7
    %v52 = vsub.s32 0, %v51
    %v53 = vrot.slane %v48, %v52
    %v54 = vlaneseq
    %v55 = vshrl.u32 %v54, 7
    %v56 = vsub.s32 1, %v55
    %v57 = vrot.slane %v48, %v56
    %v58 = vlaneseq
    %v59 = vshrl.u32 %v58, 7
    %v60 = vsub.s32 2, %v59
    %v61 = vrot.slane %v48, %v60
    %v62 = vlaneseq
    %v63 = vshrl.u32 %v62, 7
    %v64 = vsub.s32 3, %v63
    %v65 = vrot.slane %v48, %v64
    %v72 = vcombine.high %v46, %v46
    %v73 = vcombine.high %v47, %v47
    %vm74 = vcmask 31744
    %v76 = vsel %vm74, %v38, 0
    %v79 = vsel %vm74, %v39, 0
    %v82 = vsel %vm74, %v40, 0
    %v85 = vsel %vm74, %v41, 0
    %v88 = vsel %vm74, %v42, 0
    %v91 = vsel %vm74, %v43, 0
    %v94 = vsel %vm74, %v44, 0
    %v97 = vsel %vm74, %v45, 0
    %vm99 = vcmask 1043456
    %v100 = vsel %vm99, %v46, 0
    %v102 = vsel %vm99, %v72, 0
    %v104 = vsel %vm99, %v47, 0
    %v106 = vsel %vm99, %v73, 0
    %108 = vmatprep.subr.mxu0 0.0
    %109 = vmatpush1.msra.mxu0 0.0
    %110 = vmatprep.subr.mxu0 0.0
    %111 = vmatpush1.msra.mxu0 0.0
    %112 = vmatprep.subr.mxu0 0.0
    %113 = vmatpush1.msra.mxu0 0.0
    %114 = vmatprep.subr.mxu0 0.0
    %115 = vmatpush1.msra.mxu0 0.0
    %116 = vmatprep.subr.mxu0 0.0
    %117 = vmatpush1.msra.mxu0 0.0
    %118 = vmatprep.subr.mxu0 0.0
    %119 = vmatpush1.msra.mxu0 0.0
    %120 = vmatprep.subr.mxu0 0.0
    %121 = vmatpush1.msra.mxu0 0.0
    %122 = vmatprep.subr.mxu0 0.0
    %123 = vmatpush1.msra.mxu0 0.0
    %124 = vmatprep.subr.mxu0 0.0
    %125 = vmatpush1.msra.mxu0 0.0
    %126 = vmatprep.subr.mxu0 0.0
    %127 = vmatpush1.msra.mxu0 0.0
    %128 = vmatprep.subr.mxu0 0.0
    %129 = vmatpush1.msra.mxu0 0.0
    %130 = vmatprep.subr.mxu0 0.0
    %131 = vmatpush1.msra.mxu0 0.0
    %132 = vmatprep.subr.mxu0 0.0
    %133 = vmatpush1.msra.mxu0 0.0
    %134 = vmatprep.subr.mxu0 0.0
    %135 = vmatpush1.msra.mxu0 0.0
    %136 = vmatprep.subr.mxu0 0.0
    %137 = vmatpush1.msra.mxu0 0.0
    %138 = vmatprep.subr.mxu0 %v102
    %139 = vmatpush1.msra.mxu0 %v100
    %140 = vmatprep.subr.mxu0 0.0
    %141 = vmatpush2.msra.mxu0 0.0
    %142 = vmatprep.subr.mxu0 0.0
    %143 = vmatpush2.msra.mxu0 0.0
    %144 = vmatprep.subr.mxu0 0.0
    %145 = vmatpush2.msra.mxu0 0.0
    %146 = vmatprep.subr.mxu0 0.0
    %147 = vmatpush2.msra.mxu0 0.0
    %148 = vmatprep.subr.mxu0 0.0
    %149 = vmatpush2.msra.mxu0 0.0
    %150 = vmatprep.subr.mxu0 0.0
    %151 = vmatpush2.msra.mxu0 0.0
    %152 = vmatprep.subr.mxu0 0.0
    %153 = vmatpush2.msra.mxu0 0.0
    %154 = vmatprep.subr.mxu0 0.0
    %155 = vmatpush2.msra.mxu0 0.0
    %156 = vmatprep.subr.mxu0 0.0
    %157 = vmatpush2.msra.mxu0 0.0
    %158 = vmatprep.subr.mxu0 0.0
    %159 = vmatpush2.msra.mxu0 0.0
    %160 = vmatprep.subr.mxu0 0.0
    %161 = vmatpush2.msra.mxu0 0.0
    %162 = vmatprep.subr.mxu0 0.0
    %163 = vmatpush2.msra.mxu0 0.0
    %164 = vmatprep.subr.mxu0 0.0
    %165 = vmatpush2.msra.mxu0 0.0
    %166 = vmatprep.subr.mxu0 0.0
    %167 = vmatpush2.msra.mxu0 0.0
    %168 = vmatprep.subr.mxu0 0.0
    %169 = vmatpush2.msra.mxu0 0.0
    %170 = vmatprep.subr.mxu0 0.0
    %171 = vmatpush2.msra.mxu0 0.0
    %172 = vmatprep.mubr.f32.mxu0 0.0
    %173 = vmatmul.mubr.f32.gmra.mxu0 %v76
    %v174 = vpop.f32.mrf.mxu0
    %v175 = vadd.f32 %v53, %v174
    %v176 = vpop.f32.mrf.mxu0
    %v177 = vadd.f32 %v57, %v176
    %178 = vmatprep.mubr.f32.mxu0 0.0
    %179 = vmatmul.mubr.f32.gmra.mxu0 %v79
    %v180 = vpop.f32.mrf.mxu0
    %v181 = vadd.f32 %v53, %v180
    %v182 = vpop.f32.mrf.mxu0
    %v183 = vadd.f32 %v57, %v182
    %184 = vmatprep.mubr.f32.mxu0 0.0
    %185 = vmatmul.mubr.f32.gmra.mxu0 %v82
    %v186 = vpop.f32.mrf.mxu0
    %v187 = vadd.f32 %v53, %v186
    %v188 = vpop.f32.mrf.mxu0
    %v189 = vadd.f32 %v57, %v188
    %190 = vmatprep.mubr.f32.mxu0 0.0
    %191 = vmatmul.mubr.f32.gmra.mxu0 %v85
    %v192 = vpop.f32.mrf.mxu0
    %v193 = vadd.f32 %v53, %v192
    %v194 = vpop.f32.mrf.mxu0
    %v195 = vadd.f32 %v57, %v194
    %196 = vmatprep.mubr.f32.mxu0 0.0
    %197 = vmatmul.mubr.f32.gmra.mxu0 %v88
    %v198 = vpop.f32.mrf.mxu0
    %v199 = vadd.f32 %v53, %v198
    %v200 = vpop.f32.mrf.mxu0
    %v201 = vadd.f32 %v57, %v200
    %202 = vmatprep.mubr.f32.mxu0 0.0
    %203 = vmatmul.mubr.f32.gmra.mxu0 %v91
    %v204 = vpop.f32.mrf.mxu0
    %v205 = vadd.f32 %v53, %v204
    %v206 = vpop.f32.mrf.mxu0
    %v207 = vadd.f32 %v57, %v206
    %208 = vmatprep.mubr.f32.mxu0 0.0
    %209 = vmatmul.mubr.f32.gmra.mxu0 %v94
    %v210 = vpop.f32.mrf.mxu0
    %v211 = vadd.f32 %v53, %v210
    %v212 = vpop.f32.mrf.mxu0
    %v213 = vadd.f32 %v57, %v212
    %214 = vmatprep.mubr.f32.mxu0 0.0
    %215 = vmatmul.mubr.f32.gmra.mxu0 %v97
    %v216 = vpop.f32.mrf.mxu0
    %v217 = vadd.f32 %v53, %v216
    %v218 = vpop.f32.mrf.mxu0
    %v219 = vadd.f32 %v57, %v218
    %220 = vdwg.mxu0
    %221 = vmatprep.subr.mxu0 0.0
    %222 = vmatpush1.msra.mxu0 0.0
    %223 = vmatprep.subr.mxu0 0.0
    %224 = vmatpush1.msra.mxu0 0.0
    %225 = vmatprep.subr.mxu0 0.0
    %226 = vmatpush1.msra.mxu0 0.0
    %227 = vmatprep.subr.mxu0 0.0
    %228 = vmatpush1.msra.mxu0 0.0
    %229 = vmatprep.subr.mxu0 0.0
    %230 = vmatpush1.msra.mxu0 0.0
    %231 = vmatprep.subr.mxu0 0.0
    %232 = vmatpush1.msra.mxu0 0.0
    %233 = vmatprep.subr.mxu0 0.0
    %234 = vmatpush1.msra.mxu0 0.0
    %235 = vmatprep.subr.mxu0 0.0
    %236 = vmatpush1.msra.mxu0 0.0
    %237 = vmatprep.subr.mxu0 0.0
    %238 = vmatpush1.msra.mxu0 0.0
    %239 = vmatprep.subr.mxu0 0.0
    %240 = vmatpush1.msra.mxu0 0.0
    %241 = vmatprep.subr.mxu0 0.0
    %242 = vmatpush1.msra.mxu0 0.0
    %243 = vmatprep.subr.mxu0 0.0
    %244 = vmatpush1.msra.mxu0 0.0
    %245 = vmatprep.subr.mxu0 0.0
    %246 = vmatpush1.msra.mxu0 0.0
    %247 = vmatprep.subr.mxu0 0.0
    %248 = vmatpush1.msra.mxu0 0.0
    %249 = vmatprep.subr.mxu0 0.0
    %250 = vmatpush1.msra.mxu0 0.0
    %251 = vmatprep.subr.mxu0 %v106
    %252 = vmatpush1.msra.mxu0 %v104
    %253 = vmatprep.subr.mxu0 0.0
    %254 = vmatpush2.msra.mxu0 0.0
    %255 = vmatprep.subr.mxu0 0.0
    %256 = vmatpush2.msra.mxu0 0.0
    %257 = vmatprep.subr.mxu0 0.0
    %258 = vmatpush2.msra.mxu0 0.0
    %259 = vmatprep.subr.mxu0 0.0
    %260 = vmatpush2.msra.mxu0 0.0
    %261 = vmatprep.subr.mxu0 0.0
    %262 = vmatpush2.msra.mxu0 0.0
    %263 = vmatprep.subr.mxu0 0.0
    %264 = vmatpush2.msra.mxu0 0.0
    %265 = vmatprep.subr.mxu0 0.0
    %266 = vmatpush2.msra.mxu0 0.0
    %267 = vmatprep.subr.mxu0 0.0
    %268 = vmatpush2.msra.mxu0 0.0
    %269 = vmatprep.subr.mxu0 0.0
    %270 = vmatpush2.msra.mxu0 0.0
    %271 = vmatprep.subr.mxu0 0.0
    %272 = vmatpush2.msra.mxu0 0.0
    %273 = vmatprep.subr.mxu0 0.0
    %274 = vmatpush2.msra.mxu0 0.0
    %275 = vmatprep.subr.mxu0 0.0
    %276 = vmatpush2.msra.mxu0 0.0
    %277 = vmatprep.subr.mxu0 0.0
    %278 = vmatpush2.msra.mxu0 0.0
    %279 = vmatprep.subr.mxu0 0.0
    %280 = vmatpush2.msra.mxu0 0.0
    %281 = vmatprep.subr.mxu0 0.0
    %282 = vmatpush2.msra.mxu0 0.0
    %283 = vmatprep.subr.mxu0 0.0
    %284 = vmatpush2.msra.mxu0 0.0
    %285 = vmatprep.mubr.f32.mxu0 0.0
    %286 = vmatmul.mubr.f32.gmra.mxu0 %v76
    %v287 = vpop.f32.mrf.mxu0
    %v288 = vadd.f32 %v61, %v287
    %v289 = vpop.f32.mrf.mxu0
    %v290 = vadd.f32 %v65, %v289
    %291 = vmatprep.mubr.f32.mxu0 0.0
    %292 = vmatmul.mubr.f32.gmra.mxu0 %v79
    %v293 = vpop.f32.mrf.mxu0
    %v294 = vadd.f32 %v61, %v293
    %v295 = vpop.f32.mrf.mxu0
    %v296 = vadd.f32 %v65, %v295
    %297 = vmatprep.mubr.f32.mxu0 0.0
    %298 = vmatmul.mubr.f32.gmra.mxu0 %v82
    %v299 = vpop.f32.mrf.mxu0
    %v300 = vadd.f32 %v61, %v299
    %v301 = vpop.f32.mrf.mxu0
    %v302 = vadd.f32 %v65, %v301
    %303 = vmatprep.mubr.f32.mxu0 0.0
    %304 = vmatmul.mubr.f32.gmra.mxu0 %v85
    %v305 = vpop.f32.mrf.mxu0
    %v306 = vadd.f32 %v61, %v305
    %v307 = vpop.f32.mrf.mxu0
    %v308 = vadd.f32 %v65, %v307
    %309 = vmatprep.mubr.f32.mxu0 0.0
    %310 = vmatmul.mubr.f32.gmra.mxu0 %v88
    %v311 = vpop.f32.mrf.mxu0
    %v312 = vadd.f32 %v61, %v311
    %v313 = vpop.f32.mrf.mxu0
    %v314 = vadd.f32 %v65, %v313
    %315 = vmatprep.mubr.f32.mxu0 0.0
    %316 = vmatmul.mubr.f32.gmra.mxu0 %v91
    %v317 = vpop.f32.mrf.mxu0
    %v318 = vadd.f32 %v61, %v317
    %v319 = vpop.f32.mrf.mxu0
    %v320 = vadd.f32 %v65, %v319
    %321 = vmatprep.mubr.f32.mxu0 0.0
    %322 = vmatmul.mubr.f32.gmra.mxu0 %v94
    %v323 = vpop.f32.mrf.mxu0
    %v324 = vadd.f32 %v61, %v323
    %v325 = vpop.f32.mrf.mxu0
    %v326 = vadd.f32 %v65, %v325
    %327 = vmatprep.mubr.f32.mxu0 0.0
    %328 = vmatmul.mubr.f32.gmra.mxu0 %v97
    %v329 = vpop.f32.mrf.mxu0
    %v330 = vadd.f32 %v61, %v329
    %v331 = vpop.f32.mrf.mxu0
    %v332 = vadd.f32 %v65, %v331
    %333 = vdwg.mxu0
    %334 = vst [vmem:[#allocation4] sm:$0xff] %v175
    %335 = vst [vmem:[#allocation4 + $0x8] sm:$0xff] %v177
    %336 = vst [vmem:[#allocation4 + $0x10] sm:$0xff] %v288
    %337 = vst [vmem:[#allocation4 + $0x18] sm:$0xff] %v290
    %338 = vst [vmem:[#allocation4 + $0x20] sm:$0xff] %v181
    %339 = vst [vmem:[#allocation4 + $0x28] sm:$0xff] %v183
    %340 = vst [vmem:[#allocation4 + $0x30] sm:$0xff] %v294
    %341 = vst [vmem:[#allocation4 + $0x38] sm:$0xff] %v296
    %342 = vst [vmem:[#allocation4 + $0x40] sm:$0xff] %v187
    %343 = vst [vmem:[#allocation4 + $0x48] sm:$0xff] %v189
    %344 = vst [vmem:[#allocation4 + $0x50] sm:$0xff] %v300
    %345 = vst [vmem:[#allocation4 + $0x58] sm:$0xff] %v302
    %346 = vst [vmem:[#allocation4 + $0x60] sm:$0xff] %v193
    %347 = vst [vmem:[#allocation4 + $0x68] sm:$0xff] %v195
    %348 = vst [vmem:[#allocation4 + $0x70] sm:$0xff] %v306
    %349 = vst [vmem:[#allocation4 + $0x78] sm:$0xff] %v308
    %350 = vst [vmem:[#allocation4 + $0x80] sm:$0xff] %v199
    %351 = vst [vmem:[#allocation4 + $0x88] sm:$0xff] %v201
    %352 = vst [vmem:[#allocation4 + $0x90] sm:$0xff] %v312
    %353 = vst [vmem:[#allocation4 + $0x98] sm:$0xff] %v314
    %354 = vst [vmem:[#allocation4 + $0xa0] sm:$0xff] %v205
    %355 = vst [vmem:[#allocation4 + $0xa8] sm:$0xff] %v207
    %356 = vst [vmem:[#allocation4 + $0xb0] sm:$0xff] %v318
    %357 = vst [vmem:[#allocation4 + $0xb8] sm:$0xff] %v320
    %358 = vst [vmem:[#allocation4 + $0xc0] sm:$0xff] %v211
    %359 = vst [vmem:[#allocation4 + $0xc8] sm:$0xff] %v213
    %360 = vst [vmem:[#allocation4 + $0xd0] sm:$0xff] %v324
    %361 = vst [vmem:[#allocation4 + $0xd8] sm:$0xff] %v326
    %362 = vst [vmem:[#allocation4 + $0xe0] sm:$0xff] %v217
    %363 = vst [vmem:[#allocation4 + $0xe8] sm:$0xff] %v219
    %364 = vst [vmem:[#allocation4 + $0xf0] sm:$0xff] %v330
    %365 = vst [vmem:[#allocation4 + $0xf8] sm:$0xff] %v332
    %v366 = vld [vmem:[#allocation6] sm:$0xff]
    %v367 = vld [vmem:[#allocation6 + $0x8] sm:$0xff]
    %v368 = vld [vmem:[#allocation6 + $0x10] sm:$0xff]
    %v369 = vld [vmem:[#allocation6 + $0x18] sm:$0xff]
    %v370 = vld [vmem:[#allocation6 + $0x20] sm:$0xff]
    %v371 = vld [vmem:[#allocation6 + $0x28] sm:$0xff]
    %v372 = vld [vmem:[#allocation6 + $0x30] sm:$0xff]
    %v373 = vld [vmem:[#allocation6 + $0x38] sm:$0xff]
    %v374 = vld [vmem:[#allocation6 + $0x40] sm:$0xff]
    %v375 = vld [vmem:[#allocation6 + $0x48] sm:$0xff]
    %v376 = vld [vmem:[#allocation6 + $0x50] sm:$0xff]
    %v377 = vld [vmem:[#allocation6 + $0x58] sm:$0xff]
    %v378 = vld [vmem:[#allocation6 + $0x60] sm:$0xff]
    %v379 = vld [vmem:[#allocation6 + $0x68] sm:$0xff]
    %v380 = vld [vmem:[#allocation6 + $0x70] sm:$0xff]
    %v381 = vld [vmem:[#allocation6 + $0x78] sm:$0xff]
    %v382 = vld [vmem:[#allocation6 + $0x80] sm:$0xff]
    %v383 = vld [vmem:[#allocation6 + $0x88] sm:$0xff]
    %v384 = vld [vmem:[#allocation6 + $0x90] sm:$0xff]
    %v385 = vld [vmem:[#allocation6 + $0x98] sm:$0xff]
    %v386 = vld [vmem:[#allocation6 + $0xa0] sm:$0xff]
    %v387 = vld [vmem:[#allocation6 + $0xa8] sm:$0xff]
    %v388 = vld [vmem:[#allocation6 + $0xb0] sm:$0xff]
    %v389 = vld [vmem:[#allocation6 + $0xb8] sm:$0xff]
    %v390 = vld [vmem:[#allocation6 + $0xc0] sm:$0xff]
    %v391 = vld [vmem:[#allocation6 + $0xc8] sm:$0xff]
    %v392 = vld [vmem:[#allocation6 + $0xd0] sm:$0xff]
    %v393 = vld [vmem:[#allocation6 + $0xd8] sm:$0xff]
    %v394 = vld [vmem:[#allocation6 + $0xe0] sm:$0xff]
    %v395 = vld [vmem:[#allocation6 + $0xe8] sm:$0xff]
    %v396 = vld [vmem:[#allocation6 + $0xf0] sm:$0xff]
    %v397 = vld [vmem:[#allocation6 + $0xf8] sm:$0xff]
    %v398 = vld [vmem:[#allocation6 + $0x100] sm:$0xff]
    %v399 = vld [vmem:[#allocation6 + $0x108] sm:$0xff]
    %v400 = vld [vmem:[#allocation6 + $0x110] sm:$0xff]
    %v401 = vld [vmem:[#allocation6 + $0x118] sm:$0xff]
    %v402 = vld [vmem:[#allocation6 + $0x120] sm:$0xff]
    %v403 = vld [vmem:[#allocation6 + $0x128] sm:$0xff]
    %v404 = vld [vmem:[#allocation6 + $0x130] sm:$0xff]
    %v405 = vld [vmem:[#allocation6 + $0x138] sm:$0xff]
    %v406 = vld [vmem:[#allocation6 + $0x140] sm:$0xff]
    %v407 = vld [vmem:[#allocation6 + $0x148] sm:$0xff]
    %v408 = vld [vmem:[#allocation6 + $0x150] sm:$0xff]
    %v409 = vld [vmem:[#allocation6 + $0x158] sm:$0xff]
    %v410 = vld [vmem:[#allocation6 + $0x160] sm:$0xff]
    %v411 = vld [vmem:[#allocation6 + $0x168] sm:$0xff]
    %v412 = vld [vmem:[#allocation6 + $0x170] sm:$0xff]
    %v413 = vld [vmem:[#allocation6 + $0x178] sm:$0xff]
    %v414 = vld [vmem:[#allocation6 + $0x180] sm:$0xff]
    %v415 = vld [vmem:[#allocation6 + $0x188] sm:$0xff]
    %v416 = vld [vmem:[#allocation6 + $0x190] sm:$0xff]
    %v417 = vld [vmem:[#allocation6 + $0x198] sm:$0xff]
    %v418 = vld [vmem:[#allocation6 + $0x1a0] sm:$0xff]
    %v419 = vld [vmem:[#allocation6 + $0x1a8] sm:$0xff]
    %v420 = vld [vmem:[#allocation6 + $0x1b0] sm:$0xff]
    %v421 = vld [vmem:[#allocation6 + $0x1b8] sm:$0xff]
    %v422 = vld [vmem:[#allocation6 + $0x1c0] sm:$0xff]
    %v423 = vld [vmem:[#allocation6 + $0x1c8] sm:$0xff]
    %v424 = vld [vmem:[#allocation6 + $0x1d0] sm:$0xff]
    %v425 = vld [vmem:[#allocation6 + $0x1d8] sm:$0xff]
    %v426 = vld [vmem:[#allocation6 + $0x1e0] sm:$0xff]
    %v427 = vld [vmem:[#allocation6 + $0x1e8] sm:$0xff]
    %v428 = vld [vmem:[#allocation6 + $0x1f0] sm:$0xff]
    %v429 = vld [vmem:[#allocation6 + $0x1f8] sm:$0xff]
    %v430 = vld [vmem:[#allocation2] sm:$0xff]
    %v431 = vld [vmem:[#allocation3] sm:$0xff]
    %v432 = vld [vmem:[#allocation4] sm:$0xff]
    %v433 = vld [vmem:[#allocation4 + $0x8] sm:$0xff]
    %v434 = vld [vmem:[#allocation4 + $0x10] sm:$0xff]
    %v435 = vld [vmem:[#allocation4 + $0x18] sm:$0xff]
    %436 = vmatprep.subr.mxu0 %v427
    %437 = vmatpush1.msra.mxu0 %v426
    %438 = vmatprep.subr.mxu0 %v423
    %439 = vmatpush1.msra.mxu0 %v422
    %440 = vmatprep.subr.mxu0 %v419
    %441 = vmatpush1.msra.mxu0 %v418
    %442 = vmatprep.subr.mxu0 %v415
    %443 = vmatpush1.msra.mxu0 %v414
    %444 = vmatprep.subr.mxu0 %v411
    %445 = vmatpush1.msra.mxu0 %v410
    %446 = vmatprep.subr.mxu0 %v407
    %447 = vmatpush1.msra.mxu0 %v406
    %448 = vmatprep.subr.mxu0 %v403
    %449 = vmatpush1.msra.mxu0 %v402
    %450 = vmatprep.subr.mxu0 %v399
    %451 = vmatpush1.msra.mxu0 %v398
    %452 = vmatprep.subr.mxu0 %v395
    %453 = vmatpush1.msra.mxu0 %v394
    %454 = vmatprep.subr.mxu0 %v391
    %455 = vmatpush1.msra.mxu0 %v390
    %456 = vmatprep.subr.mxu0 %v387
    %457 = vmatpush1.msra.mxu0 %v386
    %458 = vmatprep.subr.mxu0 %v383
    %459 = vmatpush1.msra.mxu0 %v382
    %460 = vmatprep.subr.mxu0 %v379
    %461 = vmatpush1.msra.mxu0 %v378
    %462 = vmatprep.subr.mxu0 %v375
    %463 = vmatpush1.msra.mxu0 %v374
    %464 = vmatprep.subr.mxu0 %v371
    %465 = vmatpush1.msra.mxu0 %v370
    %466 = vmatprep.subr.mxu0 %v367
    %467 = vmatpush1.msra.mxu0 %v366
    %468 = vmatprep.subr.mxu0 0.0
    %469 = vmatpush2.msra.mxu0 0.0
    %470 = vmatprep.subr.mxu0 0.0
    %471 = vmatpush2.msra.mxu0 0.0
    %472 = vmatprep.subr.mxu0 0.0
    %473 = vmatpush2.msra.mxu0 0.0
    %474 = vmatprep.subr.mxu0 0.0
    %475 = vmatpush2.msra.mxu0 0.0
    %476 = vmatprep.subr.mxu0 0.0
    %477 = vmatpush2.msra.mxu0 0.0
    %478 = vmatprep.subr.mxu0 0.0
    %479 = vmatpush2.msra.mxu0 0.0
    %480 = vmatprep.subr.mxu0 0.0
    %481 = vmatpush2.msra.mxu0 0.0
    %482 = vmatprep.subr.mxu0 0.0
    %483 = vmatpush2.msra.mxu0 0.0
    %484 = vmatprep.subr.mxu0 0.0
    %485 = vmatpush2.msra.mxu0 0.0
    %486 = vmatprep.subr.mxu0 0.0
    %487 = vmatpush2.msra.mxu0 0.0
    %488 = vmatprep.subr.mxu0 0.0
    %489 = vmatpush2.msra.mxu0 0.0
    %490 = vmatprep.subr.mxu0 0.0
    %491 = vmatpush2.msra.mxu0 0.0
    %492 = vmatprep.subr.mxu0 0.0
    %493 = vmatpush2.msra.mxu0 0.0
    %494 = vmatprep.subr.mxu0 0.0
    %495 = vmatpush2.msra.mxu0 0.0
    %496 = vmatprep.subr.mxu0 0.0
    %497 = vmatpush2.msra.mxu0 0.0
    %498 = vmatprep.subr.mxu0 0.0
    %499 = vmatpush2.msra.mxu0 0.0
    %500 = vmatprep.mubr.f32.mxu0 0.0
    %501 = vmatmul.mubr.f32.gmra.mxu0 %v430
    %v502 = vpop.f32.mrf.mxu0
    %v503 = vadd.f32 0.0, %v502
    %v504 = vpop.f32.mrf.mxu0
    %v505 = vadd.f32 0.0, %v504
    %506 = vdwg.mxu0
    %507 = vmatprep.subr.mxu0 %v429
    %508 = vmatpush1.msra.mxu0 %v428
    %509 = vmatprep.subr.mxu0 %v425
    %510 = vmatpush1.msra.mxu0 %v424
    %511 = vmatprep.subr.mxu0 %v421
    %512 = vmatpush1.msra.mxu0 %v420
    %513 = vmatprep.subr.mxu0 %v417
    %514 = vmatpush1.msra.mxu0 %v416
    %515 = vmatprep.subr.mxu0 %v413
    %516 = vmatpush1.msra.mxu0 %v412
    %517 = vmatprep.subr.mxu0 %v409
    %518 = vmatpush1.msra.mxu0 %v408
    %519 = vmatprep.subr.mxu0 %v405
    %520 = vmatpush1.msra.mxu0 %v404
    %521 = vmatprep.subr.mxu0 %v401
    %522 = vmatpush1.msra.mxu0 %v400
    %523 = vmatprep.subr.mxu0 %v397
    %524 = vmatpush1.msra.mxu0 %v396
    %525 = vmatprep.subr.mxu0 %v393
    %526 = vmatpush1.msra.mxu0 %v392
    %527 = vmatprep.subr.mxu0 %v389
    %528 = vmatpush1.msra.mxu0 %v388
    %529 = vmatprep.subr.mxu0 %v385
    %530 = vmatpush1.msra.mxu0 %v384
    %531 = vmatprep.subr.mxu0 %v381
    %532 = vmatpush1.msra.mxu0 %v380
    %533 = vmatprep.subr.mxu0 %v377
    %534 = vmatpush1.msra.mxu0 %v376
    %535 = vmatprep.subr.mxu0 %v373
    %536 = vmatpush1.msra.mxu0 %v372
    %537 = vmatprep.subr.mxu0 %v369
    %538 = vmatpush1.msra.mxu0 %v368
    %539 = vmatprep.subr.mxu0 0.0
    %540 = vmatpush2.msra.mxu0 0.0
    %541 = vmatprep.subr.mxu0 0.0
    %542 = vmatpush2.msra.mxu0 0.0
    %543 = vmatprep.subr.mxu0 0.0
    %544 = vmatpush2.msra.mxu0 0.0
    %545 = vmatprep.subr.mxu0 0.0
    %546 = vmatpush2.msra.mxu0 0.0
    %547 = vmatprep.subr.mxu0 0.0
    %548 = vmatpush2.msra.mxu0 0.0
    %549 = vmatprep.subr.mxu0 0.0
    %550 = vmatpush2.msra.mxu0 0.0
    %551 = vmatprep.subr.mxu0 0.0
    %552 = vmatpush2.msra.mxu0 0.0
    %553 = vmatprep.subr.mxu0 0.0
    %554 = vmatpush2.msra.mxu0 0.0
    %555 = vmatprep.subr.mxu0 0.0
    %556 = vmatpush2.msra.mxu0 0.0
    %557 = vmatprep.subr.mxu0 0.0
    %558 = vmatpush2.msra.mxu0 0.0
    %559 = vmatprep.subr.mxu0 0.0
    %560 = vmatpush2.msra.mxu0 0.0
    %561 = vmatprep.subr.mxu0 0.0
    %562 = vmatpush2.msra.mxu0 0.0
    %563 = vmatprep.subr.mxu0 0.0
    %564 = vmatpush2.msra.mxu0 0.0
    %565 = vmatprep.subr.mxu0 0.0
    %566 = vmatpush2.msra.mxu0 0.0
    %567 = vmatprep.subr.mxu0 0.0
    %568 = vmatpush2.msra.mxu0 0.0
    %569 = vmatprep.subr.mxu0 0.0
    %570 = vmatpush2.msra.mxu0 0.0
    %571 = vmatprep.mubr.f32.mxu0 0.0
    %572 = vmatmul.mubr.f32.gmra.mxu0 %v430
    %v573 = vpop.f32.mrf.mxu0
    %v574 = vadd.f32 0.0, %v573
    %v575 = vpop.f32.mrf.mxu0
    %v576 = vadd.f32 0.0, %v575
    %577 = vdwg.mxu0
    %v578 = vadd.f32 %v432, %v503
    %v579 = vadd.f32 %v433, %v505
    %v580 = vadd.f32 %v434, %v574
    %v581 = vadd.f32 %v435, %v576
    %v582 = vxor.u32 %v578, 2147483648
    %v583 = vmul.f32 %v582, 1.442695
    %v584 = vpow.pop %v583
    %v585 = vadd.f32 %v584, 1.0
    %v586 = vrcp.pop %v585
    %v587 = vmul.f32 1.0, %v586
    %v588 = vxor.u32 %v579, 2147483648
    %v589 = vmul.f32 %v588, 1.442695
    %v590 = vpow.pop %v589
    %v591 = vadd.f32 %v590, 1.0
    %v592 = vrcp.pop %v591
    %v593 = vmul.f32 1.0, %v592
    %v594 = vtanh.pop %v580
    %v595 = vxor.u32 %v581, 2147483648
    %v596 = vmul.f32 %v595, 1.442695
    %v597 = vpow.pop %v596
    %v598 = vadd.f32 %v597, 1.0
    %v599 = vrcp.pop %v598
    %v600 = vmul.f32 1.0, %v599
    %v601 = vmul.f32 %v593, %v431
    %v602 = vmul.f32 %v587, %v594
    %v603 = vadd.f32 %v601, %v602
    %v604 = vtanh.pop %v603
    %v605 = vmul.f32 %v600, %v604
    %606 = vst [vmem:[#allocation5] sm:$0xff] %v605
    %s607 = scalar_lea.vmem [#allocation4], 32
    %v608 = vld [vmem:[%s607] sm:$0xff]
    %v609 = vld [vmem:[%s607 + $0x8] sm:$0xff]
    %v610 = vld [vmem:[%s607 + $0x10] sm:$0xff]
    %v611 = vld [vmem:[%s607 + $0x18] sm:$0xff]
    %612 = vmatprep.subr.mxu0 %v427
    %613 = vmatpush1.msra.mxu0 %v426
    %614 = vmatprep.subr.mxu0 %v423
    %615 = vmatpush1.msra.mxu0 %v422
    %616 = vmatprep.subr.mxu0 %v419
    %617 = vmatpush1.msra.mxu0 %v418
    %618 = vmatprep.subr.mxu0 %v415
    %619 = vmatpush1.msra.mxu0 %v414
    %620 = vmatprep.subr.mxu0 %v411
    %621 = vmatpush1.msra.mxu0 %v410
    %622 = vmatprep.subr.mxu0 %v407
    %623 = vmatpush1.msra.mxu0 %v406
    %624 = vmatprep.subr.mxu0 %v403
    %625 = vmatpush1.msra.mxu0 %v402
    %626 = vmatprep.subr.mxu0 %v399
    %627 = vmatpush1.msra.mxu0 %v398
    %628 = vmatprep.subr.mxu0 %v395
    %629 = vmatpush1.msra.mxu0 %v394
    %630 = vmatprep.subr.mxu0 %v391
    %631 = vmatpush1.msra.mxu0 %v390
    %632 = vmatprep.subr.mxu0 %v387
    %633 = vmatpush1.msra.mxu0 %v386
    %634 = vmatprep.subr.mxu0 %v383
    %635 = vmatpush1.msra.mxu0 %v382
    %636 = vmatprep.subr.mxu0 %v379
    %637 = vmatpush1.msra.mxu0 %v378
    %638 = vmatprep.subr.mxu0 %v375
    %639 = vmatpush1.msra.mxu0 %v374
    %640 = vmatprep.subr.mxu0 %v371
    %641 = vmatpush1.msra.mxu0 %v370
    %642 = vmatprep.subr.mxu0 %v367
    %643 = vmatpush1.msra.mxu0 %v366
    %644 = vmatprep.subr.mxu0 0.0
    %645 = vmatpush2.msra.mxu0 0.0
    %646 = vmatprep.subr.mxu0 0.0
    %647 = vmatpush2.msra.mxu0 0.0
    %648 = vmatprep.subr.mxu0 0.0
    %649 = vmatpush2.msra.mxu0 0.0
    %650 = vmatprep.subr.mxu0 0.0
    %651 = vmatpush2.msra.mxu0 0.0
    %652 = vmatprep.subr.mxu0 0.0
    %653 = vmatpush2.msra.mxu0 0.0
    %654 = vmatprep.subr.mxu0 0.0
    %655 = vmatpush2.msra.mxu0 0.0
    %656 = vmatprep.subr.mxu0 0.0
    %657 = vmatpush2.msra.mxu0 0.0
    %658 = vmatprep.subr.mxu0 0.0
    %659 = vmatpush2.msra.mxu0 0.0
    %660 = vmatprep.subr.mxu0 0.0
    %661 = vmatpush2.msra.mxu0 0.0
    %662 = vmatprep.subr.mxu0 0.0
    %663 = vmatpush2.msra.mxu0 0.0
    %664 = vmatprep.subr.mxu0 0.0
    %665 = vmatpush2.msra.mxu0 0.0
    %666 = vmatprep.subr.mxu0 0.0
    %667 = vmatpush2.msra.mxu0 0.0
    %668 = vmatprep.subr.mxu0 0.0
    %669 = vmatpush2.msra.mxu0 0.0
    %670 = vmatprep.subr.mxu0 0.0
    %671 = vmatpush2.msra.mxu0 0.0
    %672 = vmatprep.subr.mxu0 0.0
    %673 = vmatpush2.msra.mxu0 0.0
    %674 = vmatprep.subr.mxu0 0.0
    %675 = vmatpush2.msra.mxu0 0.0
    %676 = vmatprep.mubr.f32.mxu0 0.0
    %677 = vmatmul.mubr.f32.gmra.mxu0 %v605
    %v678 = vpop.f32.mrf.mxu0
    %v679 = vadd.f32 0.0, %v678
    %v680 = vpop.f32.mrf.mxu0
    %v681 = vadd.f32 0.0, %v680
    %682 = vdwg.mxu0
    %683 = vmatprep.subr.mxu0 %v429
    %684 = vmatpush1.msra.mxu0 %v428
    %685 = vmatprep.subr.mxu0 %v425
    %686 = vmatpush1.msra.mxu0 %v424
    %687 = vmatprep.subr.mxu0 %v421
    %688 = vmatpush1.msra.mxu0 %v420
    %689 = vmatprep.subr.mxu0 %v417
    %690 = vmatpush1.msra.mxu0 %v416
    %691 = vmatprep.subr.mxu0 %v413
    %692 = vmatpush1.msra.mxu0 %v412
    %693 = vmatprep.subr.mxu0 %v409
    %694 = vmatpush1.msra.mxu0 %v408
    %695 = vmatprep.subr.mxu0 %v405
    %696 = vmatpush1.msra.mxu0 %v404
    %697 = vmatprep.subr.mxu0 %v401
    %698 = vmatpush1.msra.mxu0 %v400
    %699 = vmatprep.subr.mxu0 %v397
    %700 = vmatpush1.msra.mxu0 %v396
    %701 = vmatprep.subr.mxu0 %v393
    %702 = vmatpush1.msra.mxu0 %v392
    %703 = vmatprep.subr.mxu0 %v389
    %704 = vmatpush1.msra.mxu0 %v388
    %705 = vmatprep.subr.mxu0 %v385
    %706 = vmatpush1.msra.mxu0 %v384
    %707 = vmatprep.subr.mxu0 %v381
    %708 = vmatpush1.msra.mxu0 %v380
    %709 = vmatprep.subr.mxu0 %v377
    %710 = vmatpush1.msra.mxu0 %v376
    %711 = vmatprep.subr.mxu0 %v373
    %712 = vmatpush1.msra.mxu0 %v372
    %713 = vmatprep.subr.mxu0 %v369
    %714 = vmatpush1.msra.mxu0 %v368
    %715 = vmatprep.subr.mxu0 0.0
    %716 = vmatpush2.msra.mxu0 0.0
    %717 = vmatprep.subr.mxu0 0.0
    %718 = vmatpush2.msra.mxu0 0.0
    %719 = vmatprep.subr.mxu0 0.0
    %720 = vmatpush2.msra.mxu0 0.0
    %721 = vmatprep.subr.mxu0 0.0
    %722 = vmatpush2.msra.mxu0 0.0
    %723 = vmatprep.subr.mxu0 0.0
    %724 = vmatpush2.msra.mxu0 0.0
    %725 = vmatprep.subr.mxu0 0.0
    %726 = vmatpush2.msra.mxu0 0.0
    %727 = vmatprep.subr.mxu0 0.0
    %728 = vmatpush2.msra.mxu0 0.0
    %729 = vmatprep.subr.mxu0 0.0
    %730 = vmatpush2.msra.mxu0 0.0
    %731 = vmatprep.subr.mxu0 0.0
    %732 = vmatpush2.msra.mxu0 0.0
    %733 = vmatprep.subr.mxu0 0.0
    %734 = vmatpush2.msra.mxu0 0.0
    %735 = vmatprep.subr.mxu0 0.0
    %736 = vmatpush2.msra.mxu0 0.0
    %737 = vmatprep.subr.mxu0 0.0
    %738 = vmatpush2.msra.mxu0 0.0
    %739 = vmatprep.subr.mxu0 0.0
    %740 = vmatpush2.msra.mxu0 0.0
    %741 = vmatprep.subr.mxu0 0.0
    %742 = vmatpush2.msra.mxu0 0.0
    %743 = vmatprep.subr.mxu0 0.0
    %744 = vmatpush2.msra.mxu0 0.0
    %745 = vmatprep.subr.mxu0 0.0
    %746 = vmatpush2.msra.mxu0 0.0
    %747 = vmatprep.mubr.f32.mxu0 0.0
    %748 = vmatmul.mubr.f32.gmra.mxu0 %v605
    %v749 = vpop.f32.mrf.mxu0
    %v750 = vadd.f32 0.0, %v749
    %v751 = vpop.f32.mrf.mxu0
    %v752 = vadd.f32 0.0, %v751
    %753 = vdwg.mxu0
    %v754 = vadd.f32 %v608, %v679
    %v755 = vadd.f32 %v609, %v681
    %v756 = vadd.f32 %v610, %v750
    %v757 = vadd.f32 %v611, %v752
    %v758 = vxor.u32 %v754, 2147483648
    %v759 = vmul.f32 %v758, 1.442695
    %v760 = vpow.pop %v759
    %v761 = vadd.f32 %v760, 1.0
    %v762 = vrcp.pop %v761
    %v763 = vmul.f32 1.0, %v762
    %v764 = vxor.u32 %v755, 2147483648
    %v765 = vmul.f32 %v764, 1.442695
    %v766 = vpow.pop %v765
    %v767 = vadd.f32 %v766, 1.0
    %v768 = vrcp.pop %v767
    %v769 = vmul.f32 1.0, %v768
    %v770 = vtanh.pop %v756
    %v771 = vxor.u32 %v757, 2147483648
    %v772 = vmul.f32 %v771, 1.442695
    %v773 = vpow.pop %v772
    %v774 = vadd.f32 %v773, 1.0
    %v775 = vrcp.pop %v774
    %v776 = vmul.f32 1.0, %v775
    %v777 = vmul.f32 %v769, %v603
    %v778 = vmul.f32 %v763, %v770
    %v779 = vadd.f32 %v777, %v778
    %v780 = vtanh.pop %v779
    %v781 = vmul.f32 %v776, %v780
    %s782 = scalar_lea.vmem [#allocation5], 8
    %783 = vst [vmem:[%s782] sm:$0xff] %v781
    %s784 = scalar_lea.vmem [#allocation4], 64
    %v785 = vld [vmem:[%s784] sm:$0xff]
    %v786 = vld [vmem:[%s784 + $0x8] sm:$0xff]
    %v787 = vld [vmem:[%s784 + $0x10] sm:$0xff]
    %v788 = vld [vmem:[%s784 + $0x18] sm:$0xff]
    %789 = vmatprep.subr.mxu0 %v427
    %790 = vmatpush1.msra.mxu0 %v426
    %791 = vmatprep.subr.mxu0 %v423
    %792 = vmatpush1.msra.mxu0 %v422
    %793 = vmatprep.subr.mxu0 %v419
    %794 = vmatpush1.msra.mxu0 %v418
    %795 = vmatprep.subr.mxu0 %v415
    %796 = vmatpush1.msra.mxu0 %v414
    %797 = vmatprep.subr.mxu0 %v411
    %798 = vmatpush1.msra.mxu0 %v410
    %799 = vmatprep.subr.mxu0 %v407
    %800 = vmatpush1.msra.mxu0 %v406
    %801 = vmatprep.subr.mxu0 %v403
    %802 = vmatpush1.msra.mxu0 %v402
    %803 = vmatprep.subr.mxu0 %v399
    %804 = vmatpush1.msra.mxu0 %v398
    %805 = vmatprep.subr.mxu0 %v395
    %806 = vmatpush1.msra.mxu0 %v394
    %807 = vmatprep.subr.mxu0 %v391
    %808 = vmatpush1.msra.mxu0 %v390
    %809 = vmatprep.subr.mxu0 %v387
    %810 = vmatpush1.msra.mxu0 %v386
    %811 = vmatprep.subr.mxu0 %v383
    %812 = vmatpush1.msra.mxu0 %v382
    %813 = vmatprep.subr.mxu0 %v379
    %814 = vmatpush1.msra.mxu0 %v378
    %815 = vmatprep.subr.mxu0 %v375
    %816 = vmatpush1.msra.mxu0 %v374
    %817 = vmatprep.subr.mxu0 %v371
    %818 = vmatpush1.msra.mxu0 %v370
    %819 = vmatprep.subr.mxu0 %v367
    %820 = vmatpush1.msra.mxu0 %v366
    %821 = vmatprep.subr.mxu0 0.0
    %822 = vmatpush2.msra.mxu0 0.0
    %823 = vmatprep.subr.mxu0 0.0
    %824 = vmatpush2.msra.mxu0 0.0
    %825 = vmatprep.subr.mxu0 0.0
    %826 = vmatpush2.msra.mxu0 0.0
    %827 = vmatprep.subr.mxu0 0.0
    %828 = vmatpush2.msra.mxu0 0.0
    %829 = vmatprep.subr.mxu0 0.0
    %830 = vmatpush2.msra.mxu0 0.0
    %831 = vmatprep.subr.mxu0 0.0
    %832 = vmatpush2.msra.mxu0 0.0
    %833 = vmatprep.subr.mxu0 0.0
    %834 = vmatpush2.msra.mxu0 0.0
    %835 = vmatprep.subr.mxu0 0.0
    %836 = vmatpush2.msra.mxu0 0.0
    %837 = vmatprep.subr.mxu0 0.0
    %838 = vmatpush2.msra.mxu0 0.0
    %839 = vmatprep.subr.mxu0 0.0
    %840 = vmatpush2.msra.mxu0 0.0
    %841 = vmatprep.subr.mxu0 0.0
    %842 = vmatpush2.msra.mxu0 0.0
    %843 = vmatprep.subr.mxu0 0.0
    %844 = vmatpush2.msra.mxu0 0.0
    %845 = vmatprep.subr.mxu0 0.0
    %846 = vmatpush2.msra.mxu0 0.0
    %847 = vmatprep.subr.mxu0 0.0
    %848 = vmatpush2.msra.mxu0 0.0
    %849 = vmatprep.subr.mxu0 0.0
    %850 = vmatpush2.msra.mxu0 0.0
    %851 = vmatprep.subr.mxu0 0.0
    %852 = vmatpush2.msra.mxu0 0.0
    %853 = vmatprep.mubr.f32.mxu0 0.0
    %854 = vmatmul.mubr.f32.gmra.mxu0 %v781
    %v855 = vpop.f32.mrf.mxu0
    %v856 = vadd.f32 0.0, %v855
    %v857 = vpop.f32.mrf.mxu0
    %v858 = vadd.f32 0.0, %v857
    %859 = vdwg.mxu0
    %860 = vmatprep.subr.mxu0 %v429
    %861 = vmatpush1.msra.mxu0 %v428
    %862 = vmatprep.subr.mxu0 %v425
    %863 = vmatpush1.msra.mxu0 %v424
    %864 = vmatprep.subr.mxu0 %v421
    %865 = vmatpush1.msra.mxu0 %v420
    %866 = vmatprep.subr.mxu0 %v417
    %867 = vmatpush1.msra.mxu0 %v416
    %868 = vmatprep.subr.mxu0 %v413
    %869 = vmatpush1.msra.mxu0 %v412
    %870 = vmatprep.subr.mxu0 %v409
    %871 = vmatpush1.msra.mxu0 %v408
    %872 = vmatprep.subr.mxu0 %v405
    %873 = vmatpush1.msra.mxu0 %v404
    %874 = vmatprep.subr.mxu0 %v401
    %875 = vmatpush1.msra.mxu0 %v400
    %876 = vmatprep.subr.mxu0 %v397
    %877 = vmatpush1.msra.mxu0 %v396
    %878 = vmatprep.subr.mxu0 %v393
    %879 = vmatpush1.msra.mxu0 %v392
    %880 = vmatprep.subr.mxu0 %v389
    %881 = vmatpush1.msra.mxu0 %v388
    %882 = vmatprep.subr.mxu0 %v385
    %883 = vmatpush1.msra.mxu0 %v384
    %884 = vmatprep.subr.mxu0 %v381
    %885 = vmatpush1.msra.mxu0 %v380
    %886 = vmatprep.subr.mxu0 %v377
    %887 = vmatpush1.msra.mxu0 %v376
    %888 = vmatprep.subr.mxu0 %v373
    %889 = vmatpush1.msra.mxu0 %v372
    %890 = vmatprep.subr.mxu0 %v369
    %891 = vmatpush1.msra.mxu0 %v368
    %892 = vmatprep.subr.mxu0 0.0
    %893 = vmatpush2.msra.mxu0 0.0
    %894 = vmatprep.subr.mxu0 0.0
    %895 = vmatpush2.msra.mxu0 0.0
    %896 = vmatprep.subr.mxu0 0.0
    %897 = vmatpush2.msra.mxu0 0.0
    %898 = vmatprep.subr.mxu0 0.0
    %899 = vmatpush2.msra.mxu0 0.0
    %900 = vmatprep.subr.mxu0 0.0
    %901 = vmatpush2.msra.mxu0 0.0
    %902 = vmatprep.subr.mxu0 0.0
    %903 = vmatpush2.msra.mxu0 0.0
    %904 = vmatprep.subr.mxu0 0.0
    %905 = vmatpush2.msra.mxu0 0.0
    %906 = vmatprep.subr.mxu0 0.0
    %907 = vmatpush2.msra.mxu0 0.0
    %908 = vmatprep.subr.mxu0 0.0
    %909 = vmatpush2.msra.mxu0 0.0
    %910 = vmatprep.subr.mxu0 0.0
    %911 = vmatpush2.msra.mxu0 0.0
    %912 = vmatprep.subr.mxu0 0.0
    %913 = vmatpush2.msra.mxu0 0.0
    %914 = vmatprep.subr.mxu0 0.0
    %915 = vmatpush2.msra.mxu0 0.0
    %916 = vmatprep.subr.mxu0 0.0
    %917 = vmatpush2.msra.mxu0 0.0
    %918 = vmatprep.subr.mxu0 0.0
    %919 = vmatpush2.msra.mxu0 0.0
    %920 = vmatprep.subr.mxu0 0.0
    %921 = vmatpush2.msra.mxu0 0.0
    %922 = vmatprep.subr.mxu0 0.0
    %923 = vmatpush2.msra.mxu0 0.0
    %924 = vmatprep.mubr.f32.mxu0 0.0
    %925 = vmatmul.mubr.f32.gmra.mxu0 %v781
    %v926 = vpop.f32.mrf.mxu0
    %v927 = vadd.f32 0.0, %v926
    %v928 = vpop.f32.mrf.mxu0
    %v929 = vadd.f32 0.0, %v928
    %930 = vdwg.mxu0
    %v931 = vadd.f32 %v785, %v856
    %v932 = vadd.f32 %v786, %v858
    %v933 = vadd.f32 %v787, %v927
    %v934 = vadd.f32 %v788, %v929
    %v935 = vxor.u32 %v931, 2147483648
    %v936 = vmul.f32 %v935, 1.442695
    %v937 = vpow.pop %v936
    %v938 = vadd.f32 %v937, 1.0
    %v939 = vrcp.pop %v938
    %v940 = vmul.f32 1.0, %v939
    %v941 = vxor.u32 %v932, 2147483648
    %v942 = vmul.f32 %v941, 1.442695
    %v943 = vpow.pop %v942
    %v944 = vadd.f32 %v943, 1.0
    %v945 = vrcp.pop %v944
    %v946 = vmul.f32 1.0, %v945
    %v947 = vtanh.pop %v933
    %v948 = vxor.u32 %v934, 2147483648
    %v949 = vmul.f32 %v948, 1.442695
    %v950 = vpow.pop %v949
    %v951 = vadd.f32 %v950, 1.0
    %v952 = vrcp.pop %v951
    %v953 = vmul.f32 1.0, %v952
    %v954 = vmul.f32 %v946, %v779
    %v955 = vmul.f32 %v940, %v947
    %v956 = vadd.f32 %v954, %v955
    %v957 = vtanh.pop %v956
    %v958 = vmul.f32 %v953, %v957
    %s959 = scalar_lea.vmem [#allocation5], 16
    %960 = vst [vmem:[%s959] sm:$0xff] %v958
    %s961 = scalar_lea.vmem [#allocation4], 96
    %v962 = vld [vmem:[%s961] sm:$0xff]
    %v963 = vld [vmem:[%s961 + $0x8] sm:$0xff]
    %v964 = vld [vmem:[%s961 + $0x10] sm:$0xff]
    %v965 = vld [vmem:[%s961 + $0x18] sm:$0xff]
    %966 = vmatprep.subr.mxu0 %v427
    %967 = vmatpush1.msra.mxu0 %v426
    %968 = vmatprep.subr.mxu0 %v423
    %969 = vmatpush1.msra.mxu0 %v422
    %970 = vmatprep.subr.mxu0 %v419
    %971 = vmatpush1.msra.mxu0 %v418
    %972 = vmatprep.subr.mxu0 %v415
    %973 = vmatpush1.msra.mxu0 %v414
    %974 = vmatprep.subr.mxu0 %v411
    %975 = vmatpush1.msra.mxu0 %v410
    %976 = vmatprep.subr.mxu0 %v407
    %977 = vmatpush1.msra.mxu0 %v406
    %978 = vmatprep.subr.mxu0 %v403
    %979 = vmatpush1.msra.mxu0 %v402
    %980 = vmatprep.subr.mxu0 %v399
    %981 = vmatpush1.msra.mxu0 %v398
    %982 = vmatprep.subr.mxu0 %v395
    %983 = vmatpush1.msra.mxu0 %v394
    %984 = vmatprep.subr.mxu0 %v391
    %985 = vmatpush1.msra.mxu0 %v390
    %986 = vmatprep.subr.mxu0 %v387
    %987 = vmatpush1.msra.mxu0 %v386
    %988 = vmatprep.subr.mxu0 %v383
    %989 = vmatpush1.msra.mxu0 %v382
    %990 = vmatprep.subr.mxu0 %v379
    %991 = vmatpush1.msra.mxu0 %v378
    %992 = vmatprep.subr.mxu0 %v375
    %993 = vmatpush1.msra.mxu0 %v374
    %994 = vmatprep.subr.mxu0 %v371
    %995 = vmatpush1.msra.mxu0 %v370
    %996 = vmatprep.subr.mxu0 %v367
    %997 = vmatpush1.msra.mxu0 %v366
    %998 = vmatprep.subr.mxu0 0.0
    %999 = vmatpush2.msra.mxu0 0.0
    %1000 = vmatprep.subr.mxu0 0.0
    %1001 = vmatpush2.msra.mxu0 0.0
    %1002 = vmatprep.subr.mxu0 0.0
    %1003 = vmatpush2.msra.mxu0 0.0
    %1004 = vmatprep.subr.mxu0 0.0
    %1005 = vmatpush2.msra.mxu0 0.0
    %1006 = vmatprep.subr.mxu0 0.0
    %1007 = vmatpush2.msra.mxu0 0.0
    %1008 = vmatprep.subr.mxu0 0.0
    %1009 = vmatpush2.msra.mxu0 0.0
    %1010 = vmatprep.subr.mxu0 0.0
    %1011 = vmatpush2.msra.mxu0 0.0
    %1012 = vmatprep.subr.mxu0 0.0
    %1013 = vmatpush2.msra.mxu0 0.0
    %1014 = vmatprep.subr.mxu0 0.0
    %1015 = vmatpush2.msra.mxu0 0.0
    %1016 = vmatprep.subr.mxu0 0.0
    %1017 = vmatpush2.msra.mxu0 0.0
    %1018 = vmatprep.subr.mxu0 0.0
    %1019 = vmatpush2.msra.mxu0 0.0
    %1020 = vmatprep.subr.mxu0 0.0
    %1021 = vmatpush2.msra.mxu0 0.0
    %1022 = vmatprep.subr.mxu0 0.0
    %1023 = vmatpush2.msra.mxu0 0.0
    %1024 = vmatprep.subr.mxu0 0.0
    %1025 = vmatpush2.msra.mxu0 0.0
    %1026 = vmatprep.subr.mxu0 0.0
    %1027 = vmatpush2.msra.mxu0 0.0
    %1028 = vmatprep.subr.mxu0 0.0
    %1029 = vmatpush2.msra.mxu0 0.0
    %1030 = vmatprep.mubr.f32.mxu0 0.0
    %1031 = vmatmul.mubr.f32.gmra.mxu0 %v958
    %v1032 = vpop.f32.mrf.mxu0
    %v1033 = vadd.f32 0.0, %v1032
    %v1034 = vpop.f32.mrf.mxu0
    %v1035 = vadd.f32 0.0, %v1034
    %1036 = vdwg.mxu0
    %1037 = vmatprep.subr.mxu0 %v429
    %1038 = vmatpush1.msra.mxu0 %v428
    %1039 = vmatprep.subr.mxu0 %v425
    %1040 = vmatpush1.msra.mxu0 %v424
    %1041 = vmatprep.subr.mxu0 %v421
    %1042 = vmatpush1.msra.mxu0 %v420
    %1043 = vmatprep.subr.mxu0 %v417
    %1044 = vmatpush1.msra.mxu0 %v416
    %1045 = vmatprep.subr.mxu0 %v413
    %1046 = vmatpush1.msra.mxu0 %v412
    %1047 = vmatprep.subr.mxu0 %v409
    %1048 = vmatpush1.msra.mxu0 %v408
    %1049 = vmatprep.subr.mxu0 %v405
    %1050 = vmatpush1.msra.mxu0 %v404
    %1051 = vmatprep.subr.mxu0 %v401
    %1052 = vmatpush1.msra.mxu0 %v400
    %1053 = vmatprep.subr.mxu0 %v397
    %1054 = vmatpush1.msra.mxu0 %v396
    %1055 = vmatprep.subr.mxu0 %v393
    %1056 = vmatpush1.msra.mxu0 %v392
    %1057 = vmatprep.subr.mxu0 %v389
    %1058 = vmatpush1.msra.mxu0 %v388
    %1059 = vmatprep.subr.mxu0 %v385
    %1060 = vmatpush1.msra.mxu0 %v384
    %1061 = vmatprep.subr.mxu0 %v381
    %1062 = vmatpush1.msra.mxu0 %v380
    %1063 = vmatprep.subr.mxu0 %v377
    %1064 = vmatpush1.msra.mxu0 %v376
    %1065 = vmatprep.subr.mxu0 %v373
    %1066 = vmatpush1.msra.mxu0 %v372
    %1067 = vmatprep.subr.mxu0 %v369
    %1068 = vmatpush1.msra.mxu0 %v368
    %1069 = vmatprep.subr.mxu0 0.0
    %1070 = vmatpush2.msra.mxu0 0.0
    %1071 = vmatprep.subr.mxu0 0.0
    %1072 = vmatpush2.msra.mxu0 0.0
    %1073 = vmatprep.subr.mxu0 0.0
    %1074 = vmatpush2.msra.mxu0 0.0
    %1075 = vmatprep.subr.mxu0 0.0
    %1076 = vmatpush2.msra.mxu0 0.0
    %1077 = vmatprep.subr.mxu0 0.0
    %1078 = vmatpush2.msra.mxu0 0.0
    %1079 = vmatprep.subr.mxu0 0.0
    %1080 = vmatpush2.msra.mxu0 0.0
    %1081 = vmatprep.subr.mxu0 0.0
    %1082 = vmatpush2.msra.mxu0 0.0
    %1083 = vmatprep.subr.mxu0 0.0
    %1084 = vmatpush2.msra.mxu0 0.0
    %1085 = vmatprep.subr.mxu0 0.0
    %1086 = vmatpush2.msra.mxu0 0.0
    %1087 = vmatprep.subr.mxu0 0.0
    %1088 = vmatpush2.msra.mxu0 0.0
    %1089 = vmatprep.subr.mxu0 0.0
    %1090 = vmatpush2.msra.mxu0 0.0
    %1091 = vmatprep.subr.mxu0 0.0
    %1092 = vmatpush2.msra.mxu0 0.0
    %1093 = vmatprep.subr.mxu0 0.0
    %1094 = vmatpush2.msra.mxu0 0.0
    %1095 = vmatprep.subr.mxu0 0.0
    %1096 = vmatpush2.msra.mxu0 0.0
    %1097 = vmatprep.subr.mxu0 0.0
    %1098 = vmatpush2.msra.mxu0 0.0
    %1099 = vmatprep.subr.mxu0 0.0
    %1100 = vmatpush2.msra.mxu0 0.0
    %1101 = vmatprep.mubr.f32.mxu0 0.0
    %1102 = vmatmul.mubr.f32.gmra.mxu0 %v958
    %v1103 = vpop.f32.mrf.mxu0
    %v1104 = vadd.f32 0.0, %v1103
    %v1105 = vpop.f32.mrf.mxu0
    %v1106 = vadd.f32 0.0, %v1105
    %1107 = vdwg.mxu0
    %v1108 = vadd.f32 %v962, %v1033
    %v1109 = vadd.f32 %v963, %v1035
    %v1110 = vadd.f32 %v964, %v1104
    %v1111 = vadd.f32 %v965, %v1106
    %v1112 = vxor.u32 %v1108, 2147483648
    %v1113 = vmul.f32 %v1112, 1.442695
    %v1114 = vpow.pop %v1113
    %v1115 = vadd.f32 %v1114, 1.0
    %v1116 = vrcp.pop %v1115
    %v1117 = vmul.f32 1.0, %v1116
    %v1118 = vxor.u32 %v1109, 2147483648
    %v1119 = vmul.f32 %v1118, 1.442695
    %v1120 = vpow.pop %v1119
    %v1121 = vadd.f32 %v1120, 1.0
    %v1122 = vrcp.pop %v1121
    %v1123 = vmul.f32 1.0, %v1122
    %v1124 = vtanh.pop %v1110
    %v1125 = vxor.u32 %v1111, 2147483648
    %v1126 = vmul.f32 %v1125, 1.442695
    %v1127 = vpow.pop %v1126
    %v1128 = vadd.f32 %v1127, 1.0
    %v1129 = vrcp.pop %v1128
    %v1130 = vmul.f32 1.0, %v1129
    %v1131 = vmul.f32 %v1123, %v956
    %v1132 = vmul.f32 %v1117, %v1124
    %v1133 = vadd.f32 %v1131, %v1132
    %v1134 = vtanh.pop %v1133
    %v1135 = vmul.f32 %v1130, %v1134
    %s1136 = scalar_lea.vmem [#allocation5], 24
    %1137 = vst [vmem:[%s1136] sm:$0xff] %v1135
    %s1138 = scalar_lea.vmem [#allocation4], 128
    %v1139 = vld [vmem:[%s1138] sm:$0xff]
    %v1140 = vld [vmem:[%s1138 + $0x8] sm:$0xff]
    %v1141 = vld [vmem:[%s1138 + $0x10] sm:$0xff]
    %v1142 = vld [vmem:[%s1138 + $0x18] sm:$0xff]
    %1143 = vmatprep.subr.mxu0 %v427
    %1144 = vmatpush1.msra.mxu0 %v426
    %1145 = vmatprep.subr.mxu0 %v423
    %1146 = vmatpush1.msra.mxu0 %v422
    %1147 = vmatprep.subr.mxu0 %v419
    %1148 = vmatpush1.msra.mxu0 %v418
    %1149 = vmatprep.subr.mxu0 %v415
    %1150 = vmatpush1.msra.mxu0 %v414
    %1151 = vmatprep.subr.mxu0 %v411
    %1152 = vmatpush1.msra.mxu0 %v410
    %1153 = vmatprep.subr.mxu0 %v407
    %1154 = vmatpush1.msra.mxu0 %v406
    %1155 = vmatprep.subr.mxu0 %v403
    %1156 = vmatpush1.msra.mxu0 %v402
    %1157 = vmatprep.subr.mxu0 %v399
    %1158 = vmatpush1.msra.mxu0 %v398
    %1159 = vmatprep.subr.mxu0 %v395
    %1160 = vmatpush1.msra.mxu0 %v394
    %1161 = vmatprep.subr.mxu0 %v391
    %1162 = vmatpush1.msra.mxu0 %v390
    %1163 = vmatprep.subr.mxu0 %v387
    %1164 = vmatpush1.msra.mxu0 %v386
    %1165 = vmatprep.subr.mxu0 %v383
    %1166 = vmatpush1.msra.mxu0 %v382
    %1167 = vmatprep.subr.mxu0 %v379
    %1168 = vmatpush1.msra.mxu0 %v378
    %1169 = vmatprep.subr.mxu0 %v375
    %1170 = vmatpush1.msra.mxu0 %v374
    %1171 = vmatprep.subr.mxu0 %v371
    %1172 = vmatpush1.msra.mxu0 %v370
    %1173 = vmatprep.subr.mxu0 %v367
    %1174 = vmatpush1.msra.mxu0 %v366
    %1175 = vmatprep.subr.mxu0 0.0
    %1176 = vmatpush2.msra.mxu0 0.0
    %1177 = vmatprep.subr.mxu0 0.0
    %1178 = vmatpush2.msra.mxu0 0.0
    %1179 = vmatprep.subr.mxu0 0.0
    %1180 = vmatpush2.msra.mxu0 0.0
    %1181 = vmatprep.subr.mxu0 0.0
    %1182 = vmatpush2.msra.mxu0 0.0
    %1183 = vmatprep.subr.mxu0 0.0
    %1184 = vmatpush2.msra.mxu0 0.0
    %1185 = vmatprep.subr.mxu0 0.0
    %1186 = vmatpush2.msra.mxu0 0.0
    %1187 = vmatprep.subr.mxu0 0.0
    %1188 = vmatpush2.msra.mxu0 0.0
    %1189 = vmatprep.subr.mxu0 0.0
    %1190 = vmatpush2.msra.mxu0 0.0
    %1191 = vmatprep.subr.mxu0 0.0
    %1192 = vmatpush2.msra.mxu0 0.0
    %1193 = vmatprep.subr.mxu0 0.0
    %1194 = vmatpush2.msra.mxu0 0.0
    %1195 = vmatprep.subr.mxu0 0.0
    %1196 = vmatpush2.msra.mxu0 0.0
    %1197 = vmatprep.subr.mxu0 0.0
    %1198 = vmatpush2.msra.mxu0 0.0
    %1199 = vmatprep.subr.mxu0 0.0
    %1200 = vmatpush2.msra.mxu0 0.0
    %1201 = vmatprep.subr.mxu0 0.0
    %1202 = vmatpush2.msra.mxu0 0.0
    %1203 = vmatprep.subr.mxu0 0.0
    %1204 = vmatpush2.msra.mxu0 0.0
    %1205 = vmatprep.subr.mxu0 0.0
    %1206 = vmatpush2.msra.mxu0 0.0
    %1207 = vmatprep.mubr.f32.mxu0 0.0
    %1208 = vmatmul.mubr.f32.gmra.mxu0 %v1135
    %v1209 = vpop.f32.mrf.mxu0
    %v1210 = vadd.f32 0.0, %v1209
    %v1211 = vpop.f32.mrf.mxu0
    %v1212 = vadd.f32 0.0, %v1211
    %1213 = vdwg.mxu0
    %1214 = vmatprep.subr.mxu0 %v429
    %1215 = vmatpush1.msra.mxu0 %v428
    %1216 = vmatprep.subr.mxu0 %v425
    %1217 = vmatpush1.msra.mxu0 %v424
    %1218 = vmatprep.subr.mxu0 %v421
    %1219 = vmatpush1.msra.mxu0 %v420
    %1220 = vmatprep.subr.mxu0 %v417
    %1221 = vmatpush1.msra.mxu0 %v416
    %1222 = vmatprep.subr.mxu0 %v413
    %1223 = vmatpush1.msra.mxu0 %v412
    %1224 = vmatprep.subr.mxu0 %v409
    %1225 = vmatpush1.msra.mxu0 %v408
    %1226 = vmatprep.subr.mxu0 %v405
    %1227 = vmatpush1.msra.mxu0 %v404
    %1228 = vmatprep.subr.mxu0 %v401
    %1229 = vmatpush1.msra.mxu0 %v400
    %1230 = vmatprep.subr.mxu0 %v397
    %1231 = vmatpush1.msra.mxu0 %v396
    %1232 = vmatprep.subr.mxu0 %v393
    %1233 = vmatpush1.msra.mxu0 %v392
    %1234 = vmatprep.subr.mxu0 %v389
    %1235 = vmatpush1.msra.mxu0 %v388
    %1236 = vmatprep.subr.mxu0 %v385
    %1237 = vmatpush1.msra.mxu0 %v384
    %1238 = vmatprep.subr.mxu0 %v381
    %1239 = vmatpush1.msra.mxu0 %v380
    %1240 = vmatprep.subr.mxu0 %v377
    %1241 = vmatpush1.msra.mxu0 %v376
    %1242 = vmatprep.subr.mxu0 %v373
    %1243 = vmatpush1.msra.mxu0 %v372
    %1244 = vmatprep.subr.mxu0 %v369
    %1245 = vmatpush1.msra.mxu0 %v368
    %1246 = vmatprep.subr.mxu0 0.0
    %1247 = vmatpush2.msra.mxu0 0.0
    %1248 = vmatprep.subr.mxu0 0.0
    %1249 = vmatpush2.msra.mxu0 0.0
    %1250 = vmatprep.subr.mxu0 0.0
    %1251 = vmatpush2.msra.mxu0 0.0
    %1252 = vmatprep.subr.mxu0 0.0
    %1253 = vmatpush2.msra.mxu0 0.0
    %1254 = vmatprep.subr.mxu0 0.0
    %1255 = vmatpush2.msra.mxu0 0.0
    %1256 = vmatprep.subr.mxu0 0.0
    %1257 = vmatpush2.msra.mxu0 0.0
    %1258 = vmatprep.subr.mxu0 0.0
    %1259 = vmatpush2.msra.mxu0 0.0
    %1260 = vmatprep.subr.mxu0 0.0
    %1261 = vmatpush2.msra.mxu0 0.0
    %1262 = vmatprep.subr.mxu0 0.0
    %1263 = vmatpush2.msra.mxu0 0.0
    %1264 = vmatprep.subr.mxu0 0.0
    %1265 = vmatpush2.msra.mxu0 0.0
    %1266 = vmatprep.subr.mxu0 0.0
    %1267 = vmatpush2.msra.mxu0 0.0
    %1268 = vmatprep.subr.mxu0 0.0
    %1269 = vmatpush2.msra.mxu0 0.0
    %1270 = vmatprep.subr.mxu0 0.0
    %1271 = vmatpush2.msra.mxu0 0.0
    %1272 = vmatprep.subr.mxu0 0.0
    %1273 = vmatpush2.msra.mxu0 0.0
    %1274 = vmatprep.subr.mxu0 0.0
    %1275 = vmatpush2.msra.mxu0 0.0
    %1276 = vmatprep.subr.mxu0 0.0
    %1277 = vmatpush2.msra.mxu0 0.0
    %1278 = vmatprep.mubr.f32.mxu0 0.0
    %1279 = vmatmul.mubr.f32.gmra.mxu0 %v1135
    %v1280 = vpop.f32.mrf.mxu0
    %v1281 = vadd.f32 0.0, %v1280
    %v1282 = vpop.f32.mrf.mxu0
    %v1283 = vadd.f32 0.0, %v1282
    %1284 = vdwg.mxu0
    %v1285 = vadd.f32 %v1139, %v1210
    %v1286 = vadd.f32 %v1140, %v1212
    %v1287 = vadd.f32 %v1141, %v1281
    %v1288 = vadd.f32 %v1142, %v1283
    %v1289 = vxor.u32 %v1285, 2147483648
    %v1290 = vmul.f32 %v1289, 1.442695
    %v1291 = vpow.pop %v1290
    %v1292 = vadd.f32 %v1291, 1.0
    %v1293 = vrcp.pop %v1292
    %v1294 = vmul.f32 1.0, %v1293
    %v1295 = vxor.u32 %v1286, 2147483648
    %v1296 = vmul.f32 %v1295, 1.442695
    %v1297 = vpow.pop %v1296
    %v1298 = vadd.f32 %v1297, 1.0
    %v1299 = vrcp.pop %v1298
    %v1300 = vmul.f32 1.0, %v1299
    %v1301 = vtanh.pop %v1287
    %v1302 = vxor.u32 %v1288, 2147483648
    %v1303 = vmul.f32 %v1302, 1.442695
    %v1304 = vpow.pop %v1303
    %v1305 = vadd.f32 %v1304, 1.0
    %v1306 = vrcp.pop %v1305
    %v1307 = vmul.f32 1.0, %v1306
    %v1308 = vmul.f32 %v1300, %v1133
    %v1309 = vmul.f32 %v1294, %v1301
    %v1310 = vadd.f32 %v1308, %v1309
    %v1311 = vtanh.pop %v1310
    %v1312 = vmul.f32 %v1307, %v1311
    %s1313 = scalar_lea.vmem [#allocation5], 32
    %1314 = vst [vmem:[%s1313] sm:$0xff] %v1312
    %s1315 = scalar_lea.vmem [#allocation4], 160
    %v1316 = vld [vmem:[%s1315] sm:$0xff]
    %v1317 = vld [vmem:[%s1315 + $0x8] sm:$0xff]
    %v1318 = vld [vmem:[%s1315 + $0x10] sm:$0xff]
    %v1319 = vld [vmem:[%s1315 + $0x18] sm:$0xff]
    %1320 = vmatprep.subr.mxu0 %v427
    %1321 = vmatpush1.msra.mxu0 %v426
    %1322 = vmatprep.subr.mxu0 %v423
    %1323 = vmatpush1.msra.mxu0 %v422
    %1324 = vmatprep.subr.mxu0 %v419
    %1325 = vmatpush1.msra.mxu0 %v418
    %1326 = vmatprep.subr.mxu0 %v415
    %1327 = vmatpush1.msra.mxu0 %v414
    %1328 = vmatprep.subr.mxu0 %v411
    %1329 = vmatpush1.msra.mxu0 %v410
    %1330 = vmatprep.subr.mxu0 %v407
    %1331 = vmatpush1.msra.mxu0 %v406
    %1332 = vmatprep.subr.mxu0 %v403
    %1333 = vmatpush1.msra.mxu0 %v402
    %1334 = vmatprep.subr.mxu0 %v399
    %1335 = vmatpush1.msra.mxu0 %v398
    %1336 = vmatprep.subr.mxu0 %v395
    %1337 = vmatpush1.msra.mxu0 %v394
    %1338 = vmatprep.subr.mxu0 %v391
    %1339 = vmatpush1.msra.mxu0 %v390
    %1340 = vmatprep.subr.mxu0 %v387
    %1341 = vmatpush1.msra.mxu0 %v386
    %1342 = vmatprep.subr.mxu0 %v383
    %1343 = vmatpush1.msra.mxu0 %v382
    %1344 = vmatprep.subr.mxu0 %v379
    %1345 = vmatpush1.msra.mxu0 %v378
    %1346 = vmatprep.subr.mxu0 %v375
    %1347 = vmatpush1.msra.mxu0 %v374
    %1348 = vmatprep.subr.mxu0 %v371
    %1349 = vmatpush1.msra.mxu0 %v370
    %1350 = vmatprep.subr.mxu0 %v367
    %1351 = vmatpush1.msra.mxu0 %v366
    %1352 = vmatprep.subr.mxu0 0.0
    %1353 = vmatpush2.msra.mxu0 0.0
    %1354 = vmatprep.subr.mxu0 0.0
    %1355 = vmatpush2.msra.mxu0 0.0
    %1356 = vmatprep.subr.mxu0 0.0
    %1357 = vmatpush2.msra.mxu0 0.0
    %1358 = vmatprep.subr.mxu0 0.0
    %1359 = vmatpush2.msra.mxu0 0.0
    %1360 = vmatprep.subr.mxu0 0.0
    %1361 = vmatpush2.msra.mxu0 0.0
    %1362 = vmatprep.subr.mxu0 0.0
    %1363 = vmatpush2.msra.mxu0 0.0
    %1364 = vmatprep.subr.mxu0 0.0
    %1365 = vmatpush2.msra.mxu0 0.0
    %1366 = vmatprep.subr.mxu0 0.0
    %1367 = vmatpush2.msra.mxu0 0.0
    %1368 = vmatprep.subr.mxu0 0.0
    %1369 = vmatpush2.msra.mxu0 0.0
    %1370 = vmatprep.subr.mxu0 0.0
    %1371 = vmatpush2.msra.mxu0 0.0
    %1372 = vmatprep.subr.mxu0 0.0
    %1373 = vmatpush2.msra.mxu0 0.0
    %1374 = vmatprep.subr.mxu0 0.0
    %1375 = vmatpush2.msra.mxu0 0.0
    %1376 = vmatprep.subr.mxu0 0.0
    %1377 = vmatpush2.msra.mxu0 0.0
    %1378 = vmatprep.subr.mxu0 0.0
    %1379 = vmatpush2.msra.mxu0 0.0
    %1380 = vmatprep.subr.mxu0 0.0
    %1381 = vmatpush2.msra.mxu0 0.0
    %1382 = vmatprep.subr.mxu0 0.0
    %1383 = vmatpush2.msra.mxu0 0.0
    %1384 = vmatprep.mubr.f32.mxu0 0.0
    %1385 = vmatmul.mubr.f32.gmra.mxu0 %v1312
    %v1386 = vpop.f32.mrf.mxu0
    %v1387 = vadd.f32 0.0, %v1386
    %v1388 = vpop.f32.mrf.mxu0
    %v1389 = vadd.f32 0.0, %v1388
    %1390 = vdwg.mxu0
    %1391 = vmatprep.subr.mxu0 %v429
    %1392 = vmatpush1.msra.mxu0 %v428
    %1393 = vmatprep.subr.mxu0 %v425
    %1394 = vmatpush1.msra.mxu0 %v424
    %1395 = vmatprep.subr.mxu0 %v421
    %1396 = vmatpush1.msra.mxu0 %v420
    %1397 = vmatprep.subr.mxu0 %v417
    %1398 = vmatpush1.msra.mxu0 %v416
    %1399 = vmatprep.subr.mxu0 %v413
    %1400 = vmatpush1.msra.mxu0 %v412
    %1401 = vmatprep.subr.mxu0 %v409
    %1402 = vmatpush1.msra.mxu0 %v408
    %1403 = vmatprep.subr.mxu0 %v405
    %1404 = vmatpush1.msra.mxu0 %v404
    %1405 = vmatprep.subr.mxu0 %v401
    %1406 = vmatpush1.msra.mxu0 %v400
    %1407 = vmatprep.subr.mxu0 %v397
    %1408 = vmatpush1.msra.mxu0 %v396
    %1409 = vmatprep.subr.mxu0 %v393
    %1410 = vmatpush1.msra.mxu0 %v392
    %1411 = vmatprep.subr.mxu0 %v389
    %1412 = vmatpush1.msra.mxu0 %v388
    %1413 = vmatprep.subr.mxu0 %v385
    %1414 = vmatpush1.msra.mxu0 %v384
    %1415 = vmatprep.subr.mxu0 %v381
    %1416 = vmatpush1.msra.mxu0 %v380
    %1417 = vmatprep.subr.mxu0 %v377
    %1418 = vmatpush1.msra.mxu0 %v376
    %1419 = vmatprep.subr.mxu0 %v373
    %1420 = vmatpush1.msra.mxu0 %v372
    %1421 = vmatprep.subr.mxu0 %v369
    %1422 = vmatpush1.msra.mxu0 %v368
    %1423 = vmatprep.subr.mxu0 0.0
    %1424 = vmatpush2.msra.mxu0 0.0
    %1425 = vmatprep.subr.mxu0 0.0
    %1426 = vmatpush2.msra.mxu0 0.0
    %1427 = vmatprep.subr.mxu0 0.0
    %1428 = vmatpush2.msra.mxu0 0.0
    %1429 = vmatprep.subr.mxu0 0.0
    %1430 = vmatpush2.msra.mxu0 0.0
    %1431 = vmatprep.subr.mxu0 0.0
    %1432 = vmatpush2.msra.mxu0 0.0
    %1433 = vmatprep.subr.mxu0 0.0
    %1434 = vmatpush2.msra.mxu0 0.0
    %1435 = vmatprep.subr.mxu0 0.0
    %1436 = vmatpush2.msra.mxu0 0.0
    %1437 = vmatprep.subr.mxu0 0.0
    %1438 = vmatpush2.msra.mxu0 0.0
    %1439 = vmatprep.subr.mxu0 0.0
    %1440 = vmatpush2.msra.mxu0 0.0
    %1441 = vmatprep.subr.mxu0 0.0
    %1442 = vmatpush2.msra.mxu0 0.0
    %1443 = vmatprep.subr.mxu0 0.0
    %1444 = vmatpush2.msra.mxu0 0.0
    %1445 = vmatprep.subr.mxu0 0.0
    %1446 = vmatpush2.msra.mxu0 0.0
    %1447 = vmatprep.subr.mxu0 0.0
    %1448 = vmatpush2.msra.mxu0 0.0
    %1449 = vmatprep.subr.mxu0 0.0
    %1450 = vmatpush2.msra.mxu0 0.0
    %1451 = vmatprep.subr.mxu0 0.0
    %1452 = vmatpush2.msra.mxu0 0.0
    %1453 = vmatprep.subr.mxu0 0.0
    %1454 = vmatpush2.msra.mxu0 0.0
    %1455 = vmatprep.mubr.f32.mxu0 0.0
    %1456 = vmatmul.mubr.f32.gmra.mxu0 %v1312
    %v1457 = vpop.f32.mrf.mxu0
    %v1458 = vadd.f32 0.0, %v1457
    %v1459 = vpop.f32.mrf.mxu0
    %v1460 = vadd.f32 0.0, %v1459
    %1461 = vdwg.mxu0
    %v1462 = vadd.f32 %v1316, %v1387
    %v1463 = vadd.f32 %v1317, %v1389
    %v1464 = vadd.f32 %v1318, %v1458
    %v1465 = vadd.f32 %v1319, %v1460
    %v1466 = vxor.u32 %v1462, 2147483648
    %v1467 = vmul.f32 %v1466, 1.442695
    %v1468 = vpow.pop %v1467
    %v1469 = vadd.f32 %v1468, 1.0
    %v1470 = vrcp.pop %v1469
    %v1471 = vmul.f32 1.0, %v1470
    %v1472 = vxor.u32 %v1463, 2147483648
    %v1473 = vmul.f32 %v1472, 1.442695
    %v1474 = vpow.pop %v1473
    %v1475 = vadd.f32 %v1474, 1.0
    %v1476 = vrcp.pop %v1475
    %v1477 = vmul.f32 1.0, %v1476
    %v1478 = vtanh.pop %v1464
    %v1479 = vxor.u32 %v1465, 2147483648
    %v1480 = vmul.f32 %v1479, 1.442695
    %v1481 = vpow.pop %v1480
    %v1482 = vadd.f32 %v1481, 1.0
    %v1483 = vrcp.pop %v1482
    %v1484 = vmul.f32 1.0, %v1483
    %v1485 = vmul.f32 %v1477, %v1310
    %v1486 = vmul.f32 %v1471, %v1478
    %v1487 = vadd.f32 %v1485, %v1486
    %v1488 = vtanh.pop %v1487
    %v1489 = vmul.f32 %v1484, %v1488
    %s1490 = scalar_lea.vmem [#allocation5], 40
    %1491 = vst [vmem:[%s1490] sm:$0xff] %v1489
    %s1492 = scalar_lea.vmem [#allocation4], 192
    %v1493 = vld [vmem:[%s1492] sm:$0xff]
    %v1494 = vld [vmem:[%s1492 + $0x8] sm:$0xff]
    %v1495 = vld [vmem:[%s1492 + $0x10] sm:$0xff]
    %v1496 = vld [vmem:[%s1492 + $0x18] sm:$0xff]
    %1497 = vmatprep.subr.mxu0 %v427
    %1498 = vmatpush1.msra.mxu0 %v426
    %1499 = vmatprep.subr.mxu0 %v423
    %1500 = vmatpush1.msra.mxu0 %v422
    %1501 = vmatprep.subr.mxu0 %v419
    %1502 = vmatpush1.msra.mxu0 %v418
    %1503 = vmatprep.subr.mxu0 %v415
    %1504 = vmatpush1.msra.mxu0 %v414
    %1505 = vmatprep.subr.mxu0 %v411
    %1506 = vmatpush1.msra.mxu0 %v410
    %1507 = vmatprep.subr.mxu0 %v407
    %1508 = vmatpush1.msra.mxu0 %v406
    %1509 = vmatprep.subr.mxu0 %v403
    %1510 = vmatpush1.msra.mxu0 %v402
    %1511 = vmatprep.subr.mxu0 %v399
    %1512 = vmatpush1.msra.mxu0 %v398
    %1513 = vmatprep.subr.mxu0 %v395
    %1514 = vmatpush1.msra.mxu0 %v394
    %1515 = vmatprep.subr.mxu0 %v391
    %1516 = vmatpush1.msra.mxu0 %v390
    %1517 = vmatprep.subr.mxu0 %v387
    %1518 = vmatpush1.msra.mxu0 %v386
    %1519 = vmatprep.subr.mxu0 %v383
    %1520 = vmatpush1.msra.mxu0 %v382
    %1521 = vmatprep.subr.mxu0 %v379
    %1522 = vmatpush1.msra.mxu0 %v378
    %1523 = vmatprep.subr.mxu0 %v375
    %1524 = vmatpush1.msra.mxu0 %v374
    %1525 = vmatprep.subr.mxu0 %v371
    %1526 = vmatpush1.msra.mxu0 %v370
    %1527 = vmatprep.subr.mxu0 %v367
    %1528 = vmatpush1.msra.mxu0 %v366
    %1529 = vmatprep.subr.mxu0 0.0
    %1530 = vmatpush2.msra.mxu0 0.0
    %1531 = vmatprep.subr.mxu0 0.0
    %1532 = vmatpush2.msra.mxu0 0.0
    %1533 = vmatprep.subr.mxu0 0.0
    %1534 = vmatpush2.msra.mxu0 0.0
    %1535 = vmatprep.subr.mxu0 0.0
    %1536 = vmatpush2.msra.mxu0 0.0
    %1537 = vmatprep.subr.mxu0 0.0
    %1538 = vmatpush2.msra.mxu0 0.0
    %1539 = vmatprep.subr.mxu0 0.0
    %1540 = vmatpush2.msra.mxu0 0.0
    %1541 = vmatprep.subr.mxu0 0.0
    %1542 = vmatpush2.msra.mxu0 0.0
    %1543 = vmatprep.subr.mxu0 0.0
    %1544 = vmatpush2.msra.mxu0 0.0
    %1545 = vmatprep.subr.mxu0 0.0
    %1546 = vmatpush2.msra.mxu0 0.0
    %1547 = vmatprep.subr.mxu0 0.0
    %1548 = vmatpush2.msra.mxu0 0.0
    %1549 = vmatprep.subr.mxu0 0.0
    %1550 = vmatpush2.msra.mxu0 0.0
    %1551 = vmatprep.subr.mxu0 0.0
    %1552 = vmatpush2.msra.mxu0 0.0
    %1553 = vmatprep.subr.mxu0 0.0
    %1554 = vmatpush2.msra.mxu0 0.0
    %1555 = vmatprep.subr.mxu0 0.0
    %1556 = vmatpush2.msra.mxu0 0.0
    %1557 = vmatprep.subr.mxu0 0.0
    %1558 = vmatpush2.msra.mxu0 0.0
    %1559 = vmatprep.subr.mxu0 0.0
    %1560 = vmatpush2.msra.mxu0 0.0
    %1561 = vmatprep.mubr.f32.mxu0 0.0
    %1562 = vmatmul.mubr.f32.gmra.mxu0 %v1489
    %v1563 = vpop.f32.mrf.mxu0
    %v1564 = vadd.f32 0.0, %v1563
    %v1565 = vpop.f32.mrf.mxu0
    %v1566 = vadd.f32 0.0, %v1565
    %1567 = vdwg.mxu0
    %1568 = vmatprep.subr.mxu0 %v429
    %1569 = vmatpush1.msra.mxu0 %v428
    %1570 = vmatprep.subr.mxu0 %v425
    %1571 = vmatpush1.msra.mxu0 %v424
    %1572 = vmatprep.subr.mxu0 %v421
    %1573 = vmatpush1.msra.mxu0 %v420
    %1574 = vmatprep.subr.mxu0 %v417
    %1575 = vmatpush1.msra.mxu0 %v416
    %1576 = vmatprep.subr.mxu0 %v413
    %1577 = vmatpush1.msra.mxu0 %v412
    %1578 = vmatprep.subr.mxu0 %v409
    %1579 = vmatpush1.msra.mxu0 %v408
    %1580 = vmatprep.subr.mxu0 %v405
    %1581 = vmatpush1.msra.mxu0 %v404
    %1582 = vmatprep.subr.mxu0 %v401
    %1583 = vmatpush1.msra.mxu0 %v400
    %1584 = vmatprep.subr.mxu0 %v397
    %1585 = vmatpush1.msra.mxu0 %v396
    %1586 = vmatprep.subr.mxu0 %v393
    %1587 = vmatpush1.msra.mxu0 %v392
    %1588 = vmatprep.subr.mxu0 %v389
    %1589 = vmatpush1.msra.mxu0 %v388
    %1590 = vmatprep.subr.mxu0 %v385
    %1591 = vmatpush1.msra.mxu0 %v384
    %1592 = vmatprep.subr.mxu0 %v381
    %1593 = vmatpush1.msra.mxu0 %v380
    %1594 = vmatprep.subr.mxu0 %v377
    %1595 = vmatpush1.msra.mxu0 %v376
    %1596 = vmatprep.subr.mxu0 %v373
    %1597 = vmatpush1.msra.mxu0 %v372
    %1598 = vmatprep.subr.mxu0 %v369
    %1599 = vmatpush1.msra.mxu0 %v368
    %1600 = vmatprep.subr.mxu0 0.0
    %1601 = vmatpush2.msra.mxu0 0.0
    %1602 = vmatprep.subr.mxu0 0.0
    %1603 = vmatpush2.msra.mxu0 0.0
    %1604 = vmatprep.subr.mxu0 0.0
    %1605 = vmatpush2.msra.mxu0 0.0
    %1606 = vmatprep.subr.mxu0 0.0
    %1607 = vmatpush2.msra.mxu0 0.0
    %1608 = vmatprep.subr.mxu0 0.0
    %1609 = vmatpush2.msra.mxu0 0.0
    %1610 = vmatprep.subr.mxu0 0.0
    %1611 = vmatpush2.msra.mxu0 0.0
    %1612 = vmatprep.subr.mxu0 0.0
    %1613 = vmatpush2.msra.mxu0 0.0
    %1614 = vmatprep.subr.mxu0 0.0
    %1615 = vmatpush2.msra.mxu0 0.0
    %1616 = vmatprep.subr.mxu0 0.0
    %1617 = vmatpush2.msra.mxu0 0.0
    %1618 = vmatprep.subr.mxu0 0.0
    %1619 = vmatpush2.msra.mxu0 0.0
    %1620 = vmatprep.subr.mxu0 0.0
    %1621 = vmatpush2.msra.mxu0 0.0
    %1622 = vmatprep.subr.mxu0 0.0
    %1623 = vmatpush2.msra.mxu0 0.0
    %1624 = vmatprep.subr.mxu0 0.0
    %1625 = vmatpush2.msra.mxu0 0.0
    %1626 = vmatprep.subr.mxu0 0.0
    %1627 = vmatpush2.msra.mxu0 0.0
    %1628 = vmatprep.subr.mxu0 0.0
    %1629 = vmatpush2.msra.mxu0 0.0
    %1630 = vmatprep.subr.mxu0 0.0
    %1631 = vmatpush2.msra.mxu0 0.0
    %1632 = vmatprep.mubr.f32.mxu0 0.0
    %1633 = vmatmul.mubr.f32.gmra.mxu0 %v1489
    %v1634 = vpop.f32.mrf.mxu0
    %v1635 = vadd.f32 0.0, %v1634
    %v1636 = vpop.f32.mrf.mxu0
    %v1637 = vadd.f32 0.0, %v1636
    %1638 = vdwg.mxu0
    %v1639 = vadd.f32 %v1493, %v1564
    %v1640 = vadd.f32 %v1494, %v1566
    %v1641 = vadd.f32 %v1495, %v1635
    %v1642 = vadd.f32 %v1496, %v1637
    %v1643 = vxor.u32 %v1639, 2147483648
    %v1644 = vmul.f32 %v1643, 1.442695
    %v1645 = vpow.pop %v1644
    %v1646 = vadd.f32 %v1645, 1.0
    %v1647 = vrcp.pop %v1646
    %v1648 = vmul.f32 1.0, %v1647
    %v1649 = vxor.u32 %v1640, 2147483648
    %v1650 = vmul.f32 %v1649, 1.442695
    %v1651 = vpow.pop %v1650
    %v1652 = vadd.f32 %v1651, 1.0
    %v1653 = vrcp.pop %v1652
    %v1654 = vmul.f32 1.0, %v1653
    %v1655 = vtanh.pop %v1641
    %v1656 = vxor.u32 %v1642, 2147483648
    %v1657 = vmul.f32 %v1656, 1.442695
    %v1658 = vpow.pop %v1657
    %v1659 = vadd.f32 %v1658, 1.0
    %v1660 = vrcp.pop %v1659
    %v1661 = vmul.f32 1.0, %v1660
    %v1662 = vmul.f32 %v1654, %v1487
    %v1663 = vmul.f32 %v1648, %v1655
    %v1664 = vadd.f32 %v1662, %v1663
    %v1665 = vtanh.pop %v1664
    %v1666 = vmul.f32 %v1661, %v1665
    %s1667 = scalar_lea.vmem [#allocation5], 48
    %1668 = vst [vmem:[%s1667] sm:$0xff] %v1666
    %s1669 = scalar_lea.vmem [#allocation4], 224
    %v1670 = vld [vmem:[%s1669] sm:$0xff]
    %v1671 = vld [vmem:[%s1669 + $0x8] sm:$0xff]
    %v1672 = vld [vmem:[%s1669 + $0x10] sm:$0xff]
    %v1673 = vld [vmem:[%s1669 + $0x18] sm:$0xff]
    %1674 = vmatprep.subr.mxu0 %v427
    %1675 = vmatpush1.msra.mxu0 %v426
    %1676 = vmatprep.subr.mxu0 %v423
    %1677 = vmatpush1.msra.mxu0 %v422
    %1678 = vmatprep.subr.mxu0 %v419
    %1679 = vmatpush1.msra.mxu0 %v418
    %1680 = vmatprep.subr.mxu0 %v415
    %1681 = vmatpush1.msra.mxu0 %v414
    %1682 = vmatprep.subr.mxu0 %v411
    %1683 = vmatpush1.msra.mxu0 %v410
    %1684 = vmatprep.subr.mxu0 %v407
    %1685 = vmatpush1.msra.mxu0 %v406
    %1686 = vmatprep.subr.mxu0 %v403
    %1687 = vmatpush1.msra.mxu0 %v402
    %1688 = vmatprep.subr.mxu0 %v399
    %1689 = vmatpush1.msra.mxu0 %v398
    %1690 = vmatprep.subr.mxu0 %v395
    %1691 = vmatpush1.msra.mxu0 %v394
    %1692 = vmatprep.subr.mxu0 %v391
    %1693 = vmatpush1.msra.mxu0 %v390
    %1694 = vmatprep.subr.mxu0 %v387
    %1695 = vmatpush1.msra.mxu0 %v386
    %1696 = vmatprep.subr.mxu0 %v383
    %1697 = vmatpush1.msra.mxu0 %v382
    %1698 = vmatprep.subr.mxu0 %v379
    %1699 = vmatpush1.msra.mxu0 %v378
    %1700 = vmatprep.subr.mxu0 %v375
    %1701 = vmatpush1.msra.mxu0 %v374
    %1702 = vmatprep.subr.mxu0 %v371
    %1703 = vmatpush1.msra.mxu0 %v370
    %1704 = vmatprep.subr.mxu0 %v367
    %1705 = vmatpush1.msra.mxu0 %v366
    %1706 = vmatprep.subr.mxu0 0.0
    %1707 = vmatpush2.msra.mxu0 0.0
    %1708 = vmatprep.subr.mxu0 0.0
    %1709 = vmatpush2.msra.mxu0 0.0
    %1710 = vmatprep.subr.mxu0 0.0
    %1711 = vmatpush2.msra.mxu0 0.0
    %1712 = vmatprep.subr.mxu0 0.0
    %1713 = vmatpush2.msra.mxu0 0.0
    %1714 = vmatprep.subr.mxu0 0.0
    %1715 = vmatpush2.msra.mxu0 0.0
    %1716 = vmatprep.subr.mxu0 0.0
    %1717 = vmatpush2.msra.mxu0 0.0
    %1718 = vmatprep.subr.mxu0 0.0
    %1719 = vmatpush2.msra.mxu0 0.0
    %1720 = vmatprep.subr.mxu0 0.0
    %1721 = vmatpush2.msra.mxu0 0.0
    %1722 = vmatprep.subr.mxu0 0.0
    %1723 = vmatpush2.msra.mxu0 0.0
    %1724 = vmatprep.subr.mxu0 0.0
    %1725 = vmatpush2.msra.mxu0 0.0
    %1726 = vmatprep.subr.mxu0 0.0
    %1727 = vmatpush2.msra.mxu0 0.0
    %1728 = vmatprep.subr.mxu0 0.0
    %1729 = vmatpush2.msra.mxu0 0.0
    %1730 = vmatprep.subr.mxu0 0.0
    %1731 = vmatpush2.msra.mxu0 0.0
    %1732 = vmatprep.subr.mxu0 0.0
    %1733 = vmatpush2.msra.mxu0 0.0
    %1734 = vmatprep.subr.mxu0 0.0
    %1735 = vmatpush2.msra.mxu0 0.0
    %1736 = vmatprep.subr.mxu0 0.0
    %1737 = vmatpush2.msra.mxu0 0.0
    %1738 = vmatprep.mubr.f32.mxu0 0.0
    %1739 = vmatmul.mubr.f32.gmra.mxu0 %v1666
    %v1740 = vpop.f32.mrf.mxu0
    %v1741 = vadd.f32 0.0, %v1740
    %v1742 = vpop.f32.mrf.mxu0
    %v1743 = vadd.f32 0.0, %v1742
    %1744 = vdwg.mxu0
    %1745 = vmatprep.subr.mxu0 %v429
    %1746 = vmatpush1.msra.mxu0 %v428
    %1747 = vmatprep.subr.mxu0 %v425
    %1748 = vmatpush1.msra.mxu0 %v424
    %1749 = vmatprep.subr.mxu0 %v421
    %1750 = vmatpush1.msra.mxu0 %v420
    %1751 = vmatprep.subr.mxu0 %v417
    %1752 = vmatpush1.msra.mxu0 %v416
    %1753 = vmatprep.subr.mxu0 %v413
    %1754 = vmatpush1.msra.mxu0 %v412
    %1755 = vmatprep.subr.mxu0 %v409
    %1756 = vmatpush1.msra.mxu0 %v408
    %1757 = vmatprep.subr.mxu0 %v405
    %1758 = vmatpush1.msra.mxu0 %v404
    %1759 = vmatprep.subr.mxu0 %v401
    %1760 = vmatpush1.msra.mxu0 %v400
    %1761 = vmatprep.subr.mxu0 %v397
    %1762 = vmatpush1.msra.mxu0 %v396
    %1763 = vmatprep.subr.mxu0 %v393
    %1764 = vmatpush1.msra.mxu0 %v392
    %1765 = vmatprep.subr.mxu0 %v389
    %1766 = vmatpush1.msra.mxu0 %v388
    %1767 = vmatprep.subr.mxu0 %v385
    %1768 = vmatpush1.msra.mxu0 %v384
    %1769 = vmatprep.subr.mxu0 %v381
    %1770 = vmatpush1.msra.mxu0 %v380
    %1771 = vmatprep.subr.mxu0 %v377
    %1772 = vmatpush1.msra.mxu0 %v376
    %1773 = vmatprep.subr.mxu0 %v373
    %1774 = vmatpush1.msra.mxu0 %v372
    %1775 = vmatprep.subr.mxu0 %v369
    %1776 = vmatpush1.msra.mxu0 %v368
    %1777 = vmatprep.subr.mxu0 0.0
    %1778 = vmatpush2.msra.mxu0 0.0
    %1779 = vmatprep.subr.mxu0 0.0
    %1780 = vmatpush2.msra.mxu0 0.0
    %1781 = vmatprep.subr.mxu0 0.0
    %1782 = vmatpush2.msra.mxu0 0.0
    %1783 = vmatprep.subr.mxu0 0.0
    %1784 = vmatpush2.msra.mxu0 0.0
    %1785 = vmatprep.subr.mxu0 0.0
    %1786 = vmatpush2.msra.mxu0 0.0
    %1787 = vmatprep.subr.mxu0 0.0
    %1788 = vmatpush2.msra.mxu0 0.0
    %1789 = vmatprep.subr.mxu0 0.0
    %1790 = vmatpush2.msra.mxu0 0.0
    %1791 = vmatprep.subr.mxu0 0.0
    %1792 = vmatpush2.msra.mxu0 0.0
    %1793 = vmatprep.subr.mxu0 0.0
    %1794 = vmatpush2.msra.mxu0 0.0
    %1795 = vmatprep.subr.mxu0 0.0
    %1796 = vmatpush2.msra.mxu0 0.0
    %1797 = vmatprep.subr.mxu0 0.0
    %1798 = vmatpush2.msra.mxu0 0.0
    %1799 = vmatprep.subr.mxu0 0.0
    %1800 = vmatpush2.msra.mxu0 0.0
    %1801 = vmatprep.subr.mxu0 0.0
    %1802 = vmatpush2.msra.mxu0 0.0
    %1803 = vmatprep.subr.mxu0 0.0
    %1804 = vmatpush2.msra.mxu0 0.0
    %1805 = vmatprep.subr.mxu0 0.0
    %1806 = vmatpush2.msra.mxu0 0.0
    %1807 = vmatprep.subr.mxu0 0.0
    %1808 = vmatpush2.msra.mxu0 0.0
    %1809 = vmatprep.mubr.f32.mxu0 0.0
    %1810 = vmatmul.mubr.f32.gmra.mxu0 %v1666
    %v1811 = vpop.f32.mrf.mxu0
    %v1812 = vadd.f32 0.0, %v1811
    %v1813 = vpop.f32.mrf.mxu0
    %v1814 = vadd.f32 0.0, %v1813
    %1815 = vdwg.mxu0
    %v1816 = vadd.f32 %v1670, %v1741
    %v1817 = vadd.f32 %v1671, %v1743
    %v1818 = vadd.f32 %v1672, %v1812
    %v1819 = vadd.f32 %v1673, %v1814
    %v1820 = vxor.u32 %v1816, 2147483648
    %v1821 = vmul.f32 %v1820, 1.442695
    %v1822 = vpow.pop %v1821
    %v1823 = vadd.f32 %v1822, 1.0
    %v1824 = vrcp.pop %v1823
    %v1825 = vmul.f32 1.0, %v1824
    %v1826 = vxor.u32 %v1817, 2147483648
    %v1827 = vmul.f32 %v1826, 1.442695
    %v1828 = vpow.pop %v1827
    %v1829 = vadd.f32 %v1828, 1.0
    %v1830 = vrcp.pop %v1829
    %v1831 = vmul.f32 1.0, %v1830
    %v1832 = vtanh.pop %v1818
    %v1833 = vxor.u32 %v1819, 2147483648
    %v1834 = vmul.f32 %v1833, 1.442695
    %v1835 = vpow.pop %v1834
    %v1836 = vadd.f32 %v1835, 1.0
    %v1837 = vrcp.pop %v1836
    %v1838 = vmul.f32 1.0, %v1837
    %v1839 = vmul.f32 %v1831, %v1664
    %v1840 = vmul.f32 %v1825, %v1832
    %v1841 = vadd.f32 %v1839, %v1840
    %v1842 = vtanh.pop %v1841
    %v1843 = vmul.f32 %v1838, %v1842
    %s1844 = scalar_lea.vmem [#allocation5], 56
    %1845 = vst [vmem:[%s1844] sm:$0xff] %v1843
    %1846 = vst [vmem:[#allocation2] sm:$0xff] %v1843
    %1847 = vst [vmem:[#allocation3] sm:$0xff] %v1841
    %v1848 = vld [vmem:[#allocation5] sm:$0xff]
    %v1849 = vld [vmem:[#allocation5 + $0x8] sm:$0xff]
    %v1850 = vld [vmem:[#allocation5 + $0x10] sm:$0xff]
    %v1851 = vld [vmem:[#allocation5 + $0x18] sm:$0xff]
    %v1852 = vld [vmem:[#allocation5 + $0x20] sm:$0xff]
    %v1853 = vld [vmem:[#allocation5 + $0x28] sm:$0xff]
    %v1854 = vld [vmem:[#allocation5 + $0x30] sm:$0xff]
    %v1855 = vld [vmem:[#allocation5 + $0x38] sm:$0xff]
    %v1856 = vcombine.low %v1848, %v1850
    %v1857 = vcombine.high %v1848, %v1850
    %v1859 = vunpack.c.l.s4 1983009808
    %v1860 = vunpack.c.0.s8 %v1859
    %v1861 = vlaneseq
    %v1862 = vshrl.u32 %v1861, 7
    %v1863 = vsub.s32 %v1860, %v1862
    %v1864 = vrot.slane %v1856, %v1863
    %v1866 = vunpack.c.l.s4 1983009808
    %v1867 = vunpack.c.0.s8 %v1866
    %v1868 = vlaneseq
    %v1869 = vshrl.u32 %v1868, 7
    %v1870 = vsub.s32 %v1867, %v1869
    %v1871 = vrot.slane %v1857, %v1870
    %v1872 = vcombine.low %v1849, %v1851
    %v1873 = vcombine.high %v1849, %v1851
    %v1875 = vunpack.c.l.s4 1983009808
    %v1876 = vunpack.c.0.s8 %v1875
    %v1877 = vlaneseq
    %v1878 = vshrl.u32 %v1877, 7
    %v1879 = vsub.s32 %v1876, %v1878
    %v1880 = vrot.slane %v1872, %v1879
    %v1882 = vunpack.c.l.s4 1983009808
    %v1883 = vunpack.c.0.s8 %v1882
    %v1884 = vlaneseq
    %v1885 = vshrl.u32 %v1884, 7
    %v1886 = vsub.s32 %v1883, %v1885
    %v1887 = vrot.slane %v1873, %v1886
    %v1888 = vcombine.low %v1852, %v1854
    %v1889 = vcombine.high %v1852, %v1854
    %v1891 = vunpack.c.l.s4 1983009808
    %v1892 = vunpack.c.0.s8 %v1891
    %v1893 = vlaneseq
    %v1894 = vshrl.u32 %v1893, 7
    %v1895 = vsub.s32 %v1892, %v1894
    %v1896 = vrot.slane %v1888, %v1895
    %v1898 = vunpack.c.l.s4 1983009808
    %v1899 = vunpack.c.0.s8 %v1898
    %v1900 = vlaneseq
    %v1901 = vshrl.u32 %v1900, 7
    %v1902 = vsub.s32 %v1899, %v1901
    %v1903 = vrot.slane %v1889, %v1902
    %v1904 = vcombine.low %v1853, %v1855
    %v1905 = vcombine.high %v1853, %v1855
    %v1907 = vunpack.c.l.s4 1983009808
    %v1908 = vunpack.c.0.s8 %v1907
    %v1909 = vlaneseq
    %v1910 = vshrl.u32 %v1909, 7
    %v1911 = vsub.s32 %v1908, %v1910
    %v1912 = vrot.slane %v1904, %v1911
    %v1914 = vunpack.c.l.s4 1983009808
    %v1915 = vunpack.c.0.s8 %v1914
    %v1916 = vlaneseq
    %v1917 = vshrl.u32 %v1916, 7
    %v1918 = vsub.s32 %v1915, %v1917
    %v1919 = vrot.slane %v1905, %v1918
    %v1920 = vcombine.low %v1864, %v1880
    %v1921 = vcombine.high %v1864, %v1880
    %v1923 = vunpack.c.l.s4 1934713408
    %v1924 = vunpack.c.0.s8 %v1923
    %v1925 = vlaneseq
    %v1926 = vshrl.u32 %v1925, 7
    %v1927 = vsub.s32 %v1924, %v1926
    %v1928 = vrot.slane %v1920, %v1927
    %v1930 = vunpack.c.l.s4 1934713408
    %v1931 = vunpack.c.0.s8 %v1930
    %v1932 = vlaneseq
    %v1933 = vshrl.u32 %v1932, 7
    %v1934 = vsub.s32 %v1931, %v1933
    %v1935 = vrot.slane %v1921, %v1934
    %v1936 = vcombine.low %v1871, %v1887
    %v1937 = vcombine.high %v1871, %v1887
    %v1939 = vunpack.c.l.s4 1934713408
    %v1940 = vunpack.c.0.s8 %v1939
    %v1941 = vlaneseq
    %v1942 = vshrl.u32 %v1941, 7
    %v1943 = vsub.s32 %v1940, %v1942
    %v1944 = vrot.slane %v1936, %v1943
    %v1946 = vunpack.c.l.s4 1934713408
    %v1947 = vunpack.c.0.s8 %v1946
    %v1948 = vlaneseq
    %v1949 = vshrl.u32 %v1948, 7
    %v1950 = vsub.s32 %v1947, %v1949
    %v1951 = vrot.slane %v1937, %v1950
    %v1952 = vcombine.low %v1896, %v1912
    %v1953 = vcombine.high %v1896, %v1912
    %v1955 = vunpack.c.l.s4 1934713408
    %v1956 = vunpack.c.0.s8 %v1955
    %v1957 = vlaneseq
    %v1958 = vshrl.u32 %v1957, 7
    %v1959 = vsub.s32 %v1956, %v1958
    %v1960 = vrot.slane %v1952, %v1959
    %v1962 = vunpack.c.l.s4 1934713408
    %v1963 = vunpack.c.0.s8 %v1962
    %v1964 = vlaneseq
    %v1965 = vshrl.u32 %v1964, 7
    %v1966 = vsub.s32 %v1963, %v1965
    %v1967 = vrot.slane %v1953, %v1966
    %v1968 = vcombine.low %v1903, %v1919
    %v1969 = vcombine.high %v1903, %v1919
    %v1971 = vunpack.c.l.s4 1934713408
    %v1972 = vunpack.c.0.s8 %v1971
    %v1973 = vlaneseq
    %v1974 = vshrl.u32 %v1973, 7
    %v1975 = vsub.s32 %v1972, %v1974
    %v1976 = vrot.slane %v1968, %v1975
    %v1978 = vunpack.c.l.s4 1934713408
    %v1979 = vunpack.c.0.s8 %v1978
    %v1980 = vlaneseq
    %v1981 = vshrl.u32 %v1980, 7
    %v1982 = vsub.s32 %v1979, %v1981
    %v1983 = vrot.slane %v1969, %v1982
    %v1984 = vcombine.low %v1928, %v1960
    %v1985 = vcombine.high %v1928, %v1960
    %v1986 = vcombine.low %v1935, %v1967
    %v1987 = vcombine.high %v1935, %v1967
    %v1988 = vcombine.low %v1944, %v1976
    %v1989 = vcombine.high %v1944, %v1976
    %v1990 = vcombine.low %v1951, %v1983
    %v1991 = vcombine.high %v1951, %v1983
    %vm1992 = vcmask 261120
    %1993 = vst.msk [vmem:[#allocation9] sm:$0xff] %vm1992, %v1984
    %1994 = vst.msk [vmem:[#allocation9 + $0x8] sm:$0xff] %vm1992, %v1985
    %1995 = vst.msk [vmem:[#allocation9 + $0x10] sm:$0xff] %vm1992, %v1986
    %1996 = vst.msk [vmem:[#allocation9 + $0x18] sm:$0xff] %vm1992, %v1987
    %1997 = vst.msk [vmem:[#allocation9 + $0x20] sm:$0xff] %vm1992, %v1988
    %1998 = vst.msk [vmem:[#allocation9 + $0x28] sm:$0xff] %vm1992, %v1989
    %1999 = vst.msk [vmem:[#allocation9 + $0x30] sm:$0xff] %vm1992, %v1990
    %2000 = vst.msk [vmem:[#allocation9 + $0x38] sm:$0xff] %vm1992, %v1991
    // Predicated region
    $region26: #{tpu_custom_call.1} parent=1 // pred_check
      _
    $region27: #{tpu_custom_call.1} parent=1 // pred_check_branch
      %2002 = sbr.rel (0) target = $region29
    $region28: #{tpu_custom_call.1} parent=1 // pred_region
      %s2004 = ssub.s32 1024, 1024
      %2005 = vsyncadd [#allocation8], %s2004
      %s2006 = sshll.u32 [#allocation9], 4
      %s2007 = int_to_ptr.vmem [resolvable:$true] %s2006
      %2012 = dma.vmem_to_hbm [thread:$0]  %s2007, 1024, %s4, [#allocation8], 128, 128, 8
    $region29: #{tpu_custom_call.1} parent=1 // pred_fallthru
      _
    // Predicated region
    $region30: #{tpu_custom_call.1} parent=1 // pred_check
      _
    $region31: #{tpu_custom_call.1} parent=1 // pred_check_branch
      %2014 = sbr.rel (0) target = $region33
    $region32: #{tpu_custom_call.1} parent=1 // pred_region
      %2015 = dma.done [#allocation8], 1024
    $region33: #{tpu_custom_call.1} parent=1 // pred_fallthru
      _
    %2016 = vsyncpa [#allocation7], 1
    %2017 = vsyncpa [#allocation8], 1

</llo_original>
